<compile_context>
chip_gen: v7x
topology: tpu7x:2x2x1
jax: 0.10.0
libtpu: 0.0.40
codegen_flags: <defaults>
</compile_context>

<pallas_src>
import jax
import jax.numpy as jnp
from jax.experimental import pallas as pl
from jax.experimental.pallas import tpu as pltpu

LANE = 128      # lane width of a vreg
SUBLANE = 8     # sublane count of a vreg
TB_CAP = 512    # max rows per grid step (mem-bound roofline ~saturates here)
MIN_KERNEL_BATCH = 64  # below this, a kernel launch costs more than the math


def _round_up(x, m):
    return ((x + m - 1) // m) * m


def fcn_kernel(x_ref, w1_ref, b1_ref, w2_ref, b2_ref, w3_ref, b3_ref, out_ref):
    # Layer 1: cast f32 input tile to bf16 on the VPU, bf16 x bf16 matmul on the MXU
    # with f32 accumulation; bias + ReLU stay f32.
    x_bf16 = x_ref[...].astype(jnp.bfloat16)
    h1 = jnp.dot(x_bf16, w1_ref[...], preferred_element_type=jnp.float32)
    h1 = jnp.maximum(h1 + b1_ref[...], 0.0)

    # Layer 2: cast activation to bf16 only as the matmul input.
    h2 = jnp.dot(h1.astype(jnp.bfloat16), w2_ref[...],
                 preferred_element_type=jnp.float32)
    h2 = jnp.maximum(h2 + b2_ref[...], 0.0)

    # Layer 3: no activation.
    out = jnp.dot(h2.astype(jnp.bfloat16), w3_ref[...],
                  preferred_element_type=jnp.float32)
    out_ref[...] = (out + b3_ref[...]).astype(out_ref.dtype)


def _choose_tb(B):
    """Sublane-aligned batch tile; aim for >= 2 grid steps (both v7x TCs busy)."""
    if B <= 16:
        return B                         # block == full array dim (allowed)
    tb = _round_up(pl.cdiv(B, 2), 16)    # split in two, keep bf16 packing friendly
    return max(16, min(TB_CAP, tb))


def _fallback_forward(x2d, padded_params, num_classes):
    """Plain-jnp path for tiny batches; identical numerics to the kernel."""
    w1, b1, w2, b2, w3, b3 = padded_params
    h = jnp.dot(x2d.astype(jnp.bfloat16), w1, preferred_element_type=jnp.float32)
    h = jnp.maximum(h + b1, 0.0)
    h = jnp.dot(h.astype(jnp.bfloat16), w2, preferred_element_type=jnp.float32)
    h = jnp.maximum(h + b2, 0.0)
    out = jnp.dot(h.astype(jnp.bfloat16), w3, preferred_element_type=jnp.float32)
    return (out + b3)[:, :num_classes]


def fcn_forward(x, padded_params, num_classes):
    """x: (B, C, H, W) or (B, F).  padded_params from prepare_params().
    Returns (B, num_classes) f32."""
    w1, b1, w2, b2, w3, b3 = padded_params
    B = x.shape[0]
    x2d = x.reshape(B, -1).astype(jnp.float32)   # torch's x.reshape(x.size(0), -1)

    in_f = w1.shape[0]
    hid_p = w1.shape[1]
    nc_p = w3.shape[1]
    assert x2d.shape[1] == in_f, f"flattened input dim {x2d.shape[1]} != {in_f}"

    if B < MIN_KERNEL_BATCH:
        return _fallback_forward(x2d, padded_params, num_classes)

    TB = _choose_tb(B)
    nb = pl.cdiv(B, TB)

    flops = 2 * B * (in_f * hid_p + hid_p * hid_p + hid_p * nc_p)
    bytes_accessed = (
        B * in_f * 4                                        # f32 input
        + (w1.size + w2.size + w3.size) * 2                 # bf16 weights
        + (b1.size + b2.size + b3.size) * 4                 # f32 biases
        + B * nc_p * 4                                      # f32 output
    )

    def const(shape):
        return pl.BlockSpec(shape, lambda i: (0, 0))        # VMEM-resident across batch

    out = pl.pallas_call(
        fcn_kernel,
        out_shape=jax.ShapeDtypeStruct((B, nc_p), jnp.float32),
        grid=(nb,),
        in_specs=[
            pl.BlockSpec((TB, in_f), lambda i: (i, 0)),     # f32 input batch tile
            const((in_f, hid_p)),                           # w1 (bf16)
            const((1, hid_p)),                              # b1 (f32)
            const((hid_p, hid_p)),                          # w2 (bf16)
            const((1, hid_p)),                              # b2 (f32)
            const((hid_p, nc_p)),                           # w3 (bf16)
            const((1, nc_p)),                               # b3 (f32)
        ],
        out_specs=pl.BlockSpec((TB, nc_p), lambda i: (i, 0)),
        compiler_params=pltpu.CompilerParams(
            dimension_semantics=("parallel",),
            vmem_limit_bytes=16 << 20,
        ),
        cost_estimate=pl.CostEstimate(
            flops=flops, transcendentals=0, bytes_accessed=bytes_accessed),
    )(x2d, w1, b1, w2, b2, w3, b3)

    return out[:, :num_classes]


def init_params(key, in_channels=28 * 28, hid_dim=100, num_classes=3):
    """Deterministic init mimicking torch.nn.Linear default
    (U[-1/sqrt(fan_in), 1/sqrt(fan_in)]).  Weights stored pre-transposed as
    (in_features, out_features), logical (unpadded) f32 shapes."""
    ks = jax.random.split(key, 6)

    def linear(kw, kb, fan_in, fan_out):
        bound = 1.0 / jnp.sqrt(jnp.float32(fan_in))
        w = jax.random.uniform(kw, (fan_in, fan_out), jnp.float32, -bound, bound)
        b = jax.random.uniform(kb, (1, fan_out), jnp.float32, -bound, bound)
        return w, b

    w1, b1 = linear(ks[0], ks[1], in_channels, hid_dim)
    w2, b2 = linear(ks[2], ks[3], hid_dim, hid_dim)
    w3, b3 = linear(ks[4], ks[5], hid_dim, num_classes)
    return (w1, b1, w2, b2, w3, b3)


def prepare_params(params):
    """One-time prep: zero-pad hid/num_classes dims to lane multiples (128) and cast
    weights to bf16 (biases stay f32).  Padding is inert through ReLU/next matmul."""
    w1, b1, w2, b2, w3, b3 = params
    in_f, hid = w1.shape
    nc = w3.shape[1]
    hid_p = _round_up(hid, LANE)
    nc_p = _round_up(nc, LANE)

    def pad2(a, rows, cols):
        return jnp.pad(a, ((0, rows - a.shape[0]), (0, cols - a.shape[1])))

    w1p = pad2(w1, in_f, hid_p).astype(jnp.bfloat16)
    b1p = pad2(b1, 1, hid_p)
    w2p = pad2(w2, hid_p, hid_p).astype(jnp.bfloat16)
    b2p = pad2(b2, 1, hid_p)
    w3p = pad2(w3, hid_p, nc_p).astype(jnp.bfloat16)
    b3p = pad2(b3, 1, nc_p)
    return (w1p, b1p, w2p, b2p, w3p, b3p)


def reference_forward(x, params):
    """Pure-JAX reference mirroring the PyTorch forward, with the same bf16
    quantization of matmul inputs as the kernel."""
    w1, b1, w2, b2, w3, b3 = params
    q = lambda a: a.astype(jnp.bfloat16).astype(jnp.float32)
    h = x.reshape(x.shape[0], -1)
    h = jnp.maximum(jnp.dot(q(h), q(w1)) + b1, 0.0)
    h = jnp.maximum(jnp.dot(q(h), q(w2)) + b2, 0.0)
    return jnp.dot(q(h), q(w3)) + b3


if __name__ == "__main__":
    key = jax.random.PRNGKey(0)
    k_x_small, k_x_big, k_p = jax.random.split(key, 3)

    # Module defaults: in_channels = 28*28 = 784, hid_dim = 100, num_classes = 3.
    C, H, W = 1, 28, 28
    params = init_params(k_p, in_channels=C * H * W, hid_dim=100, num_classes=3)
    padded_params = prepare_params(params)

    # Tiny batch (B=2): dispatched to the plain-jnp path (kernel launch not worth it).
    x_small = jax.random.normal(k_x_small, (2, C, H, W), dtype=jnp.float32)
    out_small = jax.block_until_ready(fcn_forward(x_small, padded_params, num_classes=3))
    ref_small = reference_forward(x_small, params)
    assert out_small.shape == (2, 3), out_small.shape
    assert jnp.allclose(out_small, ref_small, atol=1e-2, rtol=1e-2), "small-batch mismatch"

    # Larger batch (B=200, not a tile multiple): exercises the Pallas kernel with
    # two grid steps (both v7x TCs) and a clipped partial tail block.
    B = 200
    x_big = jax.random.normal(k_x_big, (B, C, H, W), dtype=jnp.float32)
    out_big = jax.block_until_ready(fcn_forward(x_big, padded_params, num_classes=3))
    ref_big = reference_forward(x_big, params)
    assert out_big.shape == (B, 3), out_big.shape
    assert jnp.allclose(out_big, ref_big, atol=1e-2, rtol=1e-2), "kernel mismatch vs reference"

    print("KERNEL_OK")
</pallas_src>

<mosaic_0001>
module attributes {stable_mosaic.version = 11 : i64} {
  func.func @fcn_kernel(%arg0: i32, %arg1: memref<112x784xf32, #tpu.memory_space<vmem>>, %arg2: memref<784x128xbf16, #tpu.memory_space<vmem>>, %arg3: memref<1x128xf32, #tpu.memory_space<vmem>>, %arg4: memref<128x128xbf16, #tpu.memory_space<vmem>>, %arg5: memref<1x128xf32, #tpu.memory_space<vmem>>, %arg6: memref<128x128xbf16, #tpu.memory_space<vmem>>, %arg7: memref<1x128xf32, #tpu.memory_space<vmem>>, %arg8: memref<112x128xf32, #tpu.memory_space<vmem>>) attributes {dimension_semantics = [#tpu.dimension_semantics<parallel>], iteration_bounds = array<i64: 2>, scalar_prefetch = 0 : i64, scratch_operands = 0 : i64, tpu.core_type = #tpu.core_type<tc>, window_params = [{transform_indices = @transform_0, window_bounds = array<i64: 112, 784>}, {pipeline_mode = #tpu.pipeline_mode<synchronous>, transform_indices = @transform_1, window_bounds = array<i64: 784, 128>}, {pipeline_mode = #tpu.pipeline_mode<synchronous>, transform_indices = @transform_2, window_bounds = array<i64: 1, 128>}, {pipeline_mode = #tpu.pipeline_mode<synchronous>, transform_indices = @transform_3, window_bounds = array<i64: 128, 128>}, {pipeline_mode = #tpu.pipeline_mode<synchronous>, transform_indices = @transform_4, window_bounds = array<i64: 1, 128>}, {pipeline_mode = #tpu.pipeline_mode<synchronous>, transform_indices = @transform_5, window_bounds = array<i64: 128, 128>}, {pipeline_mode = #tpu.pipeline_mode<synchronous>, transform_indices = @transform_6, window_bounds = array<i64: 1, 128>}, {transform_indices = @transform_7, window_bounds = array<i64: 112, 128>}]} {
    %c0 = arith.constant 0 : index
    %c0_0 = arith.constant 0 : index
    %0 = vector.load %arg1[%c0, %c0_0] : memref<112x784xf32, #tpu.memory_space<vmem>>, vector<112x784xf32>
    %1 = arith.truncf %0 : vector<112x784xf32> to vector<112x784xbf16>
    %c0_1 = arith.constant 0 : index
    %c0_2 = arith.constant 0 : index
    %2 = vector.load %arg2[%c0_1, %c0_2] : memref<784x128xbf16, #tpu.memory_space<vmem>>, vector<784x128xbf16>
    %cst = arith.constant dense<0.000000e+00> : vector<112x128xf32>
    %3 = tpu.matmul %1, %2, %cst {dimension_numbers = #tpu.dot_dimension_numbers<[1], [0], [0], [1], [0, 0, 1, 1], [], []>} : vector<112x784xbf16>, vector<784x128xbf16>, vector<112x128xf32> -> vector<112x128xf32>
    %c0_3 = arith.constant 0 : index
    %c0_4 = arith.constant 0 : index
    %4 = vector.load %arg3[%c0_3, %c0_4] : memref<1x128xf32, #tpu.memory_space<vmem>>, vector<1x128xf32>
    %5 = vector.broadcast %4 : vector<1x128xf32> to vector<112x128xf32>
    %6 = arith.addf %3, %5 : vector<112x128xf32>
    %cst_5 = arith.constant 0.000000e+00 : f32
    %7 = vector.broadcast %cst_5 : f32 to vector<112x128xf32>
    %8 = arith.maximumf %6, %7 : vector<112x128xf32>
    %9 = arith.truncf %8 : vector<112x128xf32> to vector<112x128xbf16>
    %c0_6 = arith.constant 0 : index
    %c0_7 = arith.constant 0 : index
    %10 = vector.load %arg4[%c0_6, %c0_7] : memref<128x128xbf16, #tpu.memory_space<vmem>>, vector<128x128xbf16>
    %cst_8 = arith.constant dense<0.000000e+00> : vector<112x128xf32>
    %11 = tpu.matmul %9, %10, %cst_8 {dimension_numbers = #tpu.dot_dimension_numbers<[1], [0], [0], [1], [0, 0, 1, 1], [], []>} : vector<112x128xbf16>, vector<128x128xbf16>, vector<112x128xf32> -> vector<112x128xf32>
    %c0_9 = arith.constant 0 : index
    %c0_10 = arith.constant 0 : index
    %12 = vector.load %arg5[%c0_9, %c0_10] : memref<1x128xf32, #tpu.memory_space<vmem>>, vector<1x128xf32>
    %13 = vector.broadcast %12 : vector<1x128xf32> to vector<112x128xf32>
    %14 = arith.addf %11, %13 : vector<112x128xf32>
    %cst_11 = arith.constant 0.000000e+00 : f32
    %15 = vector.broadcast %cst_11 : f32 to vector<112x128xf32>
    %16 = arith.maximumf %14, %15 : vector<112x128xf32>
    %17 = arith.truncf %16 : vector<112x128xf32> to vector<112x128xbf16>
    %c0_12 = arith.constant 0 : index
    %c0_13 = arith.constant 0 : index
    %18 = vector.load %arg6[%c0_12, %c0_13] : memref<128x128xbf16, #tpu.memory_space<vmem>>, vector<128x128xbf16>
    %cst_14 = arith.constant dense<0.000000e+00> : vector<112x128xf32>
    %19 = tpu.matmul %17, %18, %cst_14 {dimension_numbers = #tpu.dot_dimension_numbers<[1], [0], [0], [1], [0, 0, 1, 1], [], []>} : vector<112x128xbf16>, vector<128x128xbf16>, vector<112x128xf32> -> vector<112x128xf32>
    %c0_15 = arith.constant 0 : index
    %c0_16 = arith.constant 0 : index
    %20 = vector.load %arg7[%c0_15, %c0_16] : memref<1x128xf32, #tpu.memory_space<vmem>>, vector<1x128xf32>
    %21 = vector.broadcast %20 : vector<1x128xf32> to vector<112x128xf32>
    %22 = arith.addf %19, %21 : vector<112x128xf32>
    %c0_17 = arith.constant 0 : index
    %c0_18 = arith.constant 0 : index
    %23 = vector.load %arg8[%c0_17, %c0_18] : memref<112x128xf32, #tpu.memory_space<vmem>>, vector<112x128xf32>
    tpu.vector_store %arg8[%c0_17, %c0_18], %22 {strides = array<i32>} : memref<112x128xf32, #tpu.memory_space<vmem>>, vector<112x128xf32>,
    return
  }
  func.func @transform_0(%arg0: i32) -> (i32, i32) {
    %c0_i32 = arith.constant 0 : i32
    %c0_i32_0 = arith.constant 0 : i32
    return %arg0, %c0_i32 : i32, i32
  }
  func.func @transform_1(%arg0: i32) -> (i32, i32) {
    %c0_i32 = arith.constant 0 : i32
    %c0_i32_0 = arith.constant 0 : i32
    %c0_i32_1 = arith.constant 0 : i32
    return %c0_i32, %c0_i32_0 : i32, i32
  }
  func.func @transform_2(%arg0: i32) -> (i32, i32) {
    %c0_i32 = arith.constant 0 : i32
    %c0_i32_0 = arith.constant 0 : i32
    %c0_i32_1 = arith.constant 0 : i32
    return %c0_i32, %c0_i32_0 : i32, i32
  }
  func.func @transform_3(%arg0: i32) -> (i32, i32) {
    %c0_i32 = arith.constant 0 : i32
    %c0_i32_0 = arith.constant 0 : i32
    %c0_i32_1 = arith.constant 0 : i32
    return %c0_i32, %c0_i32_0 : i32, i32
  }
  func.func @transform_4(%arg0: i32) -> (i32, i32) {
    %c0_i32 = arith.constant 0 : i32
    %c0_i32_0 = arith.constant 0 : i32
    %c0_i32_1 = arith.constant 0 : i32
    return %c0_i32, %c0_i32_0 : i32, i32
  }
  func.func @transform_5(%arg0: i32) -> (i32, i32) {
    %c0_i32 = arith.constant 0 : i32
    %c0_i32_0 = arith.constant 0 : i32
    %c0_i32_1 = arith.constant 0 : i32
    return %c0_i32, %c0_i32_0 : i32, i32
  }
  func.func @transform_6(%arg0: i32) -> (i32, i32) {
    %c0_i32 = arith.constant 0 : i32
    %c0_i32_0 = arith.constant 0 : i32
    %c0_i32_1 = arith.constant 0 : i32
    return %c0_i32, %c0_i32_0 : i32, i32
  }
  func.func @transform_7(%arg0: i32) -> (i32, i32) {
    %c0_i32 = arith.constant 0 : i32
    %c0_i32_0 = arith.constant 0 : i32
    return %arg0, %c0_i32 : i32, i32
  }
}

</mosaic_0001>

<llo_original>
// kernel: tpu_custom_call.1
$region0: #{tpu_custom_call.1}
  #allocation0 [shape = 'u32[]', space=smem, size = 0x4, offset = 0x4, fixed_abs, tag = 'smem constant byte address 0x4 - core index']
  #allocation1 [shape = 'u32[144,128]{1,0:T(1,128)}', space=vmem, size = 0x12000, scoped, tag = 'internal scratch']
  %s0 = inlined_call_operand.hbm [shape: f32[200,784], index: 0, kind: input, shape index: {}]
  %s1 = inlined_call_operand.hbm [shape: bf16[784,128], index: 1, kind: input, shape index: {}]
  %s2 = inlined_call_operand.vmem [shape: f32[1,128], index: 2, kind: input, shape index: {}]
  %s3 = inlined_call_operand.hbm [shape: bf16[128,128], index: 3, kind: input, shape index: {}]
  %s4 = inlined_call_operand.vmem [shape: f32[1,128], index: 4, kind: input, shape index: {}]
  %s5 = inlined_call_operand.hbm [shape: bf16[128,128], index: 5, kind: input, shape index: {}]
  %s6 = inlined_call_operand.vmem [shape: f32[1,128], index: 6, kind: input, shape index: {}]
  %s7 = inlined_call_operand.hbm [shape: f32[200,128], index: 7, kind: output, shape index: {}]
  %s8 = sld [smem:[#allocation0]]
  $region77: #{tpu_custom_call.1} parent=0
    _
  %s10 = ssub.s32 1, %s8
  %s11 = scalar_select 0, %s10, %s8
  $region1: #{tpu_custom_call.1} parent=0
    #allocation2 [shape = 'u8[802816]{0}', space=vmem, size = 0xc4000, scoped, tag = 'input window, operand 0']
    #allocation3 [shape = 's32[2]{0}', space=sflag, size = 0x8, scoped, tag = 'scoped memory for tpu_custom_call.1']
    #allocation4 [shape = 's32[2]{0}', space=sflag, size = 0x8, scoped, tag = 'scoped memory for tpu_custom_call.1']
    #allocation5 [shape = 'u8[200704]{0}', space=vmem, size = 0x31000, scoped, tag = 'input window, operand 1, single buffered']
    #allocation6 [shape = 's32[1]{0}', space=sflag, size = 0x4, scoped, tag = 'scoped memory for tpu_custom_call.1']
    #allocation7 [shape = 'u8[32768]{0}', space=vmem, size = 0x8000, scoped, tag = 'input window, operand 3, single buffered']
    #allocation8 [shape = 'u8[32768]{0}', space=vmem, size = 0x8000, scoped, tag = 'input window, operand 5, single buffered']
    #allocation9 [shape = 's32[1]{0}', space=sflag, size = 0x4, scoped, tag = 'scoped memory for tpu_custom_call.1']
    #allocation10 [shape = 'u8[114688]{0}', space=vmem, size = 0x1c000, scoped, tag = 'output window, operand 0']
    %12 = vsyncpa [#allocation3], 0
    %s13 = scalar_lea.sflag [#allocation3], 1
    %14 = vsyncpa %s13, 0
    %15 = vsyncpa [#allocation6], 0
    %16 = vsyncpa [#allocation9], 0
    %17 = vsyncpa [#allocation4], 0
    %s18 = scalar_lea.sflag [#allocation4], 1
    %19 = vsyncpa %s18, 0
    loop: start=0, step=1, limit=4
    $region2: #{tpu_custom_call.1} parent=1 // loop_pre_header
      _
    $region3: #{tpu_custom_call.1} parent=1 // loop_header
      %s21 = sphi 0, %s25
      %p22 = scmp.ge.s32.totalorder %s21, 4
      %s31 = sphi 0, %s33
      %s34 = sphi 0, %s31
      %s35 = sphi 0, %s34
      %s51 = sphi 0, %s35
      %s55 = sphi 0, %s55
      %s57 = sphi 0, %s55
      %s58 = sphi 0, %s57
      %s72 = sphi 0, %s58
      %s76 = sphi 0, %s76
      %s78 = sphi 0, %s76
      %s79 = sphi 0, %s78
      %s93 = sphi 0, %s79
      %s97 = sphi 0, %s97
      %s99 = sphi 0, %s97
      %s100 = sphi 0, %s99
      %s114 = sphi 0, %s100
      %s118 = sphi 0, %s118
      %s120 = sphi 0, %s118
      %s121 = sphi 0, %s120
      %s135 = sphi 0, %s121
      %s139 = sphi 0, %s139
      %s141 = sphi 0, %s139
      %s142 = sphi 0, %s141
      %s156 = sphi 0, %s142
      %s160 = sphi 0, %s160
      %s162 = sphi 0, %s160
      %s163 = sphi 0, %s162
      %s177 = sphi 0, %s163
      %s183 = sphi 0, %s185
      %s186 = sphi 0, %s183
      %s187 = sphi 0, %s186
      %s203 = sphi 0, %s187
    $region4: #{tpu_custom_call.1} parent=1 // loop_header_branch
      %24 = sbr.rel (%p22) target = $region8
    $region5: #{tpu_custom_call.1} parent=1 // loop_body
      %s26 = ssub.s32 %s21, 1
      %s27 = ssub.s32 %s21, 2
      %s28 = sadd.s32 %s21, 1
      %s29 = ssub.s32 %s21, %s28
      %p30 = scmp.eq.s32.totalorder %s29, 0
      %s32 = sadd.s32 %s31, 1
      %s33 = scalar_select %p30, %s31, %s32
      %p36 = pneg %p30
      %p37 = scmp.eq.s32.totalorder %s21, 1
      %p38 = por %p36, %p37
      %p39 = scmp.ne.s32.totalorder %s31, %s34
      %p40 = scmp.eq.s32.totalorder %s21, 0
      %p41 = por %p39, %p40
      %p42 = scmp.ne.s32.totalorder %s31, %s34
      %p43 = scmp.eq.s32.totalorder %s26, 1
      %p44 = por %p42, %p43
      %p45 = scmp.ne.s32.totalorder %s34, %s35
      %p46 = scmp.eq.s32.totalorder %s26, 0
      %p47 = por %p45, %p46
      %p48 = scmp.ne.s32.totalorder %s34, %s35
      %p49 = scmp.eq.s32.totalorder %s27, 1
      %p50 = por %p48, %p49
      %p52 = scmp.ne.s32.totalorder %s35, %s51
      %p53 = scmp.eq.s32.totalorder %s27, 0
      %p54 = por %p52, %p53
      %s56 = sadd.s32 %s55, 1
      %p59 = scmp.eq.s32.totalorder %s21, 1
      %p60 = scmp.ne.s32.totalorder %s55, %s57
      %p61 = scmp.eq.s32.totalorder %s21, 0
      %p62 = por %p60, %p61
      %p63 = scmp.ne.s32.totalorder %s55, %s57
      %p64 = scmp.eq.s32.totalorder %s26, 1
      %p65 = por %p63, %p64
      %p66 = scmp.ne.s32.totalorder %s57, %s58
      %p67 = scmp.eq.s32.totalorder %s26, 0
      %p68 = por %p66, %p67
      %p69 = scmp.ne.s32.totalorder %s57, %s58
      %p70 = scmp.eq.s32.totalorder %s27, 1
      %p71 = por %p69, %p70
      %p73 = scmp.ne.s32.totalorder %s58, %s72
      %p74 = scmp.eq.s32.totalorder %s27, 0
      %p75 = por %p73, %p74
      %s77 = sadd.s32 %s76, 1
      %p80 = scmp.eq.s32.totalorder %s21, 1
      %p81 = scmp.ne.s32.totalorder %s76, %s78
      %p82 = scmp.eq.s32.totalorder %s21, 0
      %p83 = por %p81, %p82
      %p84 = scmp.ne.s32.totalorder %s76, %s78
      %p85 = scmp.eq.s32.totalorder %s26, 1
      %p86 = por %p84, %p85
      %p87 = scmp.ne.s32.totalorder %s78, %s79
      %p88 = scmp.eq.s32.totalorder %s26, 0
      %p89 = por %p87, %p88
      %p90 = scmp.ne.s32.totalorder %s78, %s79
      %p91 = scmp.eq.s32.totalorder %s27, 1
      %p92 = por %p90, %p91
      %p94 = scmp.ne.s32.totalorder %s79, %s93
      %p95 = scmp.eq.s32.totalorder %s27, 0
      %p96 = por %p94, %p95
      %s98 = sadd.s32 %s97, 1
      %p101 = scmp.eq.s32.totalorder %s21, 1
      %p102 = scmp.ne.s32.totalorder %s97, %s99
      %p103 = scmp.eq.s32.totalorder %s21, 0
      %p104 = por %p102, %p103
      %p105 = scmp.ne.s32.totalorder %s97, %s99
      %p106 = scmp.eq.s32.totalorder %s26, 1
      %p107 = por %p105, %p106
      %p108 = scmp.ne.s32.totalorder %s99, %s100
      %p109 = scmp.eq.s32.totalorder %s26, 0
      %p110 = por %p108, %p109
      %p111 = scmp.ne.s32.totalorder %s99, %s100
      %p112 = scmp.eq.s32.totalorder %s27, 1
      %p113 = por %p111, %p112
      %p115 = scmp.ne.s32.totalorder %s100, %s114
      %p116 = scmp.eq.s32.totalorder %s27, 0
      %p117 = por %p115, %p116
      %s119 = sadd.s32 %s118, 1
      %p122 = scmp.eq.s32.totalorder %s21, 1
      %p123 = scmp.ne.s32.totalorder %s118, %s120
      %p124 = scmp.eq.s32.totalorder %s21, 0
      %p125 = por %p123, %p124
      %p126 = scmp.ne.s32.totalorder %s118, %s120
      %p127 = scmp.eq.s32.totalorder %s26, 1
      %p128 = por %p126, %p127
      %p129 = scmp.ne.s32.totalorder %s120, %s121
      %p130 = scmp.eq.s32.totalorder %s26, 0
      %p131 = por %p129, %p130
      %p132 = scmp.ne.s32.totalorder %s120, %s121
      %p133 = scmp.eq.s32.totalorder %s27, 1
      %p134 = por %p132, %p133
      %p136 = scmp.ne.s32.totalorder %s121, %s135
      %p137 = scmp.eq.s32.totalorder %s27, 0
      %p138 = por %p136, %p137
      %s140 = sadd.s32 %s139, 1
      %p143 = scmp.eq.s32.totalorder %s21, 1
      %p144 = scmp.ne.s32.totalorder %s139, %s141
      %p145 = scmp.eq.s32.totalorder %s21, 0
      %p146 = por %p144, %p145
      %p147 = scmp.ne.s32.totalorder %s139, %s141
      %p148 = scmp.eq.s32.totalorder %s26, 1
      %p149 = por %p147, %p148
      %p150 = scmp.ne.s32.totalorder %s141, %s142
      %p151 = scmp.eq.s32.totalorder %s26, 0
      %p152 = por %p150, %p151
      %p153 = scmp.ne.s32.totalorder %s141, %s142
      %p154 = scmp.eq.s32.totalorder %s27, 1
      %p155 = por %p153, %p154
      %p157 = scmp.ne.s32.totalorder %s142, %s156
      %p158 = scmp.eq.s32.totalorder %s27, 0
      %p159 = por %p157, %p158
      %s161 = sadd.s32 %s160, 1
      %p164 = scmp.eq.s32.totalorder %s21, 1
      %p165 = scmp.ne.s32.totalorder %s160, %s162
      %p166 = scmp.eq.s32.totalorder %s21, 0
      %p167 = por %p165, %p166
      %p168 = scmp.ne.s32.totalorder %s160, %s162
      %p169 = scmp.eq.s32.totalorder %s26, 1
      %p170 = por %p168, %p169
      %p171 = scmp.ne.s32.totalorder %s162, %s163
      %p172 = scmp.eq.s32.totalorder %s26, 0
      %p173 = por %p171, %p172
      %p174 = scmp.ne.s32.totalorder %s162, %s163
      %p175 = scmp.eq.s32.totalorder %s27, 1
      %p176 = por %p174, %p175
      %p178 = scmp.ne.s32.totalorder %s163, %s177
      %p179 = scmp.eq.s32.totalorder %s27, 0
      %p180 = por %p178, %p179
      %s181 = ssub.s32 %s21, %s28
      %p182 = scmp.eq.s32.totalorder %s181, 0
      %s184 = sadd.s32 %s183, 1
      %s185 = scalar_select %p182, %s183, %s184
      %p188 = pneg %p182
      %p189 = scmp.eq.s32.totalorder %s21, 1
      %p190 = por %p188, %p189
      %p191 = scmp.ne.s32.totalorder %s183, %s186
      %p192 = scmp.eq.s32.totalorder %s21, 0
      %p193 = por %p191, %p192
      %p194 = scmp.ne.s32.totalorder %s183, %s186
      %p195 = scmp.eq.s32.totalorder %s26, 1
      %p196 = por %p194, %p195
      %p197 = scmp.ne.s32.totalorder %s186, %s187
      %p198 = scmp.eq.s32.totalorder %s26, 0
      %p199 = por %p197, %p198
      %p200 = scmp.ne.s32.totalorder %s186, %s187
      %p201 = scmp.eq.s32.totalorder %s27, 1
      %p202 = por %p200, %p201
      %p204 = scmp.ne.s32.totalorder %s187, %s203
      %p205 = scmp.eq.s32.totalorder %s27, 0
      %p206 = por %p204, %p205
      %p207 = scmp.le.s32.totalorder 1, %s21
      %p208 = scmp.lt.s32.totalorder %s21, 3
      %p209 = pnand %p207, %p208
      %p210 = pneg %p209
      // Predicated region
      $region9: #{tpu_custom_call.1} parent=5 // pred_check
        _
      $region10: #{tpu_custom_call.1} parent=5 // pred_check_branch
        %212 = sbr.rel (%p209) target = $region12
      $region11: #{tpu_custom_call.1} parent=5 // pred_region
        %s213 = ssub.s32 %s21, 1
        // Predicated region
        $region13: #{tpu_custom_call.1} parent=11 // pred_check
          %p214 = pneg %p68
        $region14: #{tpu_custom_call.1} parent=11 // pred_check_branch
          %216 = sbr.rel (%p214) target = $region16
        $region15: #{tpu_custom_call.1} parent=11 // pred_region
          %s218 = ssub.s32 6272, 6272
          %219 = vsyncadd [#allocation6], %s218
          %s220 = sshll.u32 [#allocation5], 4
          %s221 = int_to_ptr.vmem [resolvable:$true] %s220
          %226 = dma.hbm_to_vmem [thread:$0]  %s1, 6272, %s221, [#allocation6], 64, 64, 4
        $region16: #{tpu_custom_call.1} parent=11 // pred_fallthru
          _
        // Predicated region
        $region17: #{tpu_custom_call.1} parent=11 // pred_check
          %p227 = pneg %p89
        $region18: #{tpu_custom_call.1} parent=11 // pred_check_branch
          %229 = sbr.rel (%p227) target = $region20
        $region19: #{tpu_custom_call.1} parent=11 // pred_region
          _
        $region20: #{tpu_custom_call.1} parent=11 // pred_fallthru
          _
        // Predicated region
        $region21: #{tpu_custom_call.1} parent=11 // pred_check
          %p230 = pneg %p110
        $region22: #{tpu_custom_call.1} parent=11 // pred_check_branch
          %232 = sbr.rel (%p230) target = $region24
        $region23: #{tpu_custom_call.1} parent=11 // pred_region
          %s234 = ssub.s32 1024, 1024
          %235 = vsyncadd [#allocation6], %s234
          %s236 = sshll.u32 [#allocation7], 4
          %s237 = int_to_ptr.vmem [resolvable:$true] %s236
          %242 = dma.hbm_to_vmem [thread:$0]  %s3, 1024, %s237, [#allocation6], 64, 64, 4
        $region24: #{tpu_custom_call.1} parent=11 // pred_fallthru
          _
        // Predicated region
        $region25: #{tpu_custom_call.1} parent=11 // pred_check
          %p243 = pneg %p131
        $region26: #{tpu_custom_call.1} parent=11 // pred_check_branch
          %245 = sbr.rel (%p243) target = $region28
        $region27: #{tpu_custom_call.1} parent=11 // pred_region
          _
        $region28: #{tpu_custom_call.1} parent=11 // pred_fallthru
          _
        // Predicated region
        $region29: #{tpu_custom_call.1} parent=11 // pred_check
          %p246 = pneg %p152
        $region30: #{tpu_custom_call.1} parent=11 // pred_check_branch
          %248 = sbr.rel (%p246) target = $region32
        $region31: #{tpu_custom_call.1} parent=11 // pred_region
          %s250 = ssub.s32 1024, 1024
          %251 = vsyncadd [#allocation9], %s250
          %s252 = sshll.u32 [#allocation8], 4
          %s253 = int_to_ptr.vmem [resolvable:$true] %s252
          %258 = dma.hbm_to_vmem [thread:$0]  %s5, 1024, %s253, [#allocation9], 64, 64, 4
        $region32: #{tpu_custom_call.1} parent=11 // pred_fallthru
          _
        // Predicated region
        $region33: #{tpu_custom_call.1} parent=11 // pred_check
          %p259 = pneg %p173
        $region34: #{tpu_custom_call.1} parent=11 // pred_check_branch
          %261 = sbr.rel (%p259) target = $region36
        $region35: #{tpu_custom_call.1} parent=11 // pred_region
          _
        $region36: #{tpu_custom_call.1} parent=11 // pred_fallthru
          _
      $region12: #{tpu_custom_call.1} parent=5 // pred_fallthru
        _
      %p262 = scmp.lt.s32.totalorder %s21, 2
      // Predicated region
      $region37: #{tpu_custom_call.1} parent=5 // pred_check
        %p263 = pneg %p262
      $region38: #{tpu_custom_call.1} parent=5 // pred_check_branch
        %265 = sbr.rel (%p263) target = $region40
      $region39: #{tpu_custom_call.1} parent=5 // pred_region
        // Predicated region
        $region41: #{tpu_custom_call.1} parent=39 // pred_check
          %p266 = pneg %p41
        $region42: #{tpu_custom_call.1} parent=39 // pred_check_branch
          %268 = sbr.rel (%p266) target = $region44
        $region43: #{tpu_custom_call.1} parent=39 // pred_region
          %s269 = sand.u32 %s31, 1
          %s270 = scalar_lea.sflag [#allocation3], %s269
          %s271 = sand.u32 %s31, 1
          %s272 = smul.addr %s271, 784
          %s273 = scalar_lea.vmem [#allocation2], %s272
          %s274 = smul.u32 14, %s21
          %s275 = ssub.s32 25, %s274
          %p276 = scmp.lt.s32.totalorder %s275, 14
          %s277 = scalar_select %p276, %s275, 14
          %s278 = smul.u32 128, %s277
          %s279 = smul.u32 %s278, 7
          %s281 = ssub.s32 12544, %s279
          %282 = vsyncadd %s270, %s281
          %p283 = scmp.ne.s32.totalorder 0, %s279
          %s284 = smul.addr %s274, 7
          %s285 = smul.addr %s284, 128
          %s286 = scalar_lea.hbm %s0, %s285
          %s287 = smul.u32 56, %s277
          %s288 = sshll.u32 %s273, 4
          %s289 = int_to_ptr.vmem [resolvable:$true] %s288
          %s290 = sshll.u32 %s287, 4
          %294 = dma.hbm_to_vmem [thread:$0]  (%p283), %s286, %s290, %s289, %s270, 896, 896, 56
        $region44: #{tpu_custom_call.1} parent=39 // pred_fallthru
          _
      $region40: #{tpu_custom_call.1} parent=5 // pred_fallthru
        _
      %p295 = scmp.le.s32.totalorder 1, %s21
      %p296 = scmp.lt.s32.totalorder %s21, 3
      %p297 = pnand %p295, %p296
      %p298 = pneg %p297
      // Predicated region
      $region45: #{tpu_custom_call.1} parent=5 // pred_check
        _
      $region46: #{tpu_custom_call.1} parent=5 // pred_check_branch
        %300 = sbr.rel (%p297) target = $region48
      $region47: #{tpu_custom_call.1} parent=5 // pred_region
        %s301 = ssub.s32 %s21, 1
        %s302 = sand.u32 %s34, 1
        %s303 = scalar_lea.sflag [#allocation3], %s302
        %s304 = sand.u32 %s34, 1
        %s305 = smul.addr %s304, 784
        %s306 = scalar_lea.vmem [#allocation2], %s305
        // Predicated region
        $region49: #{tpu_custom_call.1} parent=47 // pred_check
          %p307 = pneg %p47
        $region50: #{tpu_custom_call.1} parent=47 // pred_check_branch
          %309 = sbr.rel (%p307) target = $region52
        $region51: #{tpu_custom_call.1} parent=47 // pred_region
          %310 = dma.done %s303, 12544
        $region52: #{tpu_custom_call.1} parent=47 // pred_fallthru
          _
        // Predicated region
        $region53: #{tpu_custom_call.1} parent=47 // pred_check
          %p311 = pneg %p68
        $region54: #{tpu_custom_call.1} parent=47 // pred_check_branch
          %313 = sbr.rel (%p311) target = $region56
        $region55: #{tpu_custom_call.1} parent=47 // pred_region
          %314 = dma.done [#allocation6], 6272
        $region56: #{tpu_custom_call.1} parent=47 // pred_fallthru
          _
        // Predicated region
        $region57: #{tpu_custom_call.1} parent=47 // pred_check
          %p315 = pneg %p110
        $region58: #{tpu_custom_call.1} parent=47 // pred_check_branch
          %317 = sbr.rel (%p315) target = $region60
        $region59: #{tpu_custom_call.1} parent=47 // pred_region
          %318 = dma.done [#allocation6], 1024
        $region60: #{tpu_custom_call.1} parent=47 // pred_fallthru
          _
        // Predicated region
        $region61: #{tpu_custom_call.1} parent=47 // pred_check
          %p319 = pneg %p152
        $region62: #{tpu_custom_call.1} parent=47 // pred_check_branch
          %321 = sbr.rel (%p319) target = $region64
        $region63: #{tpu_custom_call.1} parent=47 // pred_region
          %322 = dma.done [#allocation9], 1024
        $region64: #{tpu_custom_call.1} parent=47 // pred_fallthru
          _
        %s323 = sand.u32 %s34, 1
        %s324 = scalar_lea.sflag [#allocation3], %s323
        %s325 = sand.u32 %s34, 1
        %s326 = smul.addr %s325, 784
        %s327 = scalar_lea.vmem [#allocation2], %s326
        %p328 = pneg %p47
        %p329 = pneg %p44
        %p330 = pneg %p68
        %p331 = pneg %p65
        %p332 = pneg %p89
        %p333 = pneg %p86
        %p334 = pneg %p110
        %p335 = pneg %p107
        %p336 = pneg %p131
        %p337 = pneg %p128
        %p338 = pneg %p152
        %p339 = pneg %p149
        %p340 = pneg %p173
        %p341 = pneg %p170
        %p342 = pneg %p199
        %p343 = pneg %p196
        %s344 = sand.u32 %s186, 1
        %s345 = scalar_lea.sflag [#allocation4], %s344
        %s346 = sand.u32 %s186, 1
        %s347 = smul.addr %s346, 112
        %s348 = scalar_lea.vmem [#allocation10], %s347
        %s349 = smul.u32 14, %s26
        %s350 = ssub.s32 25, %s349
        %p351 = scmp.lt.s32.totalorder %s350, 14
        %s352 = scalar_select %p351, %s350, 14
        %s353 = smul.u32 128, %s352
        %s354 = smul.u32 %s353, 7
        %s355 = smul.u32 14, %s26
        %s356 = ssub.s32 25, %s355
        %p357 = scmp.lt.s32.totalorder %s356, 14
        %s358 = scalar_select %p357, %s356, 14
        %s359 = smul.u32 128, %s358
        %v361 = vld [vmem:[%s306] sm:$0xff]
        %v362 = vld [vmem:[%s306 + $0x8] sm:$0xff]
        %v363 = vld [vmem:[%s306 + $0x10] sm:$0xff]
        %v364 = vld [vmem:[%s306 + $0x18] sm:$0xff]
        %v365 = vld [vmem:[%s306 + $0x20] sm:$0xff]
        %v366 = vld [vmem:[%s306 + $0x28] sm:$0xff]
        %v367 = vld [vmem:[%s306 + $0x30] sm:$0xff]
        %v368 = vld [vmem:[%s306 + $0x38] sm:$0xff]
        %v369 = vld [vmem:[%s306 + $0x40] sm:$0xff]
        %v370 = vld [vmem:[%s306 + $0x48] sm:$0xff]
        %v371 = vld [vmem:[%s306 + $0x50] sm:$0xff]
        %v372 = vld [vmem:[%s306 + $0x58] sm:$0xff]
        %v373 = vld [vmem:[%s306 + $0x60] sm:$0xff]
        %v374 = vld [vmem:[%s306 + $0x68] sm:$0xff]
        %v375 = vld [vmem:[%s306 + $0x70] sm:$0xff]
        %v376 = vld [vmem:[%s306 + $0x78] sm:$0xff]
        %v377 = vld [vmem:[%s306 + $0x80] sm:$0xff]
        %v378 = vld [vmem:[%s306 + $0x88] sm:$0xff]
        %v379 = vld [vmem:[%s306 + $0x90] sm:$0xff]
        %v380 = vld [vmem:[%s306 + $0x98] sm:$0xff]
        %v381 = vld [vmem:[%s306 + $0xa0] sm:$0xff]
        %v382 = vld [vmem:[%s306 + $0xa8] sm:$0xff]
        %v383 = vld [vmem:[%s306 + $0xb0] sm:$0xff]
        %v384 = vld [vmem:[%s306 + $0xb8] sm:$0xff]
        %v385 = vld [vmem:[%s306 + $0xc0] sm:$0xff]
        %v386 = vld [vmem:[%s306 + $0xc8] sm:$0xff]
        %v387 = vld [vmem:[%s306 + $0xd0] sm:$0xff]
        %v388 = vld [vmem:[%s306 + $0xd8] sm:$0xff]
        %v389 = vld [vmem:[%s306 + $0xe0] sm:$0xff]
        %v390 = vld [vmem:[%s306 + $0xe8] sm:$0xff]
        %v391 = vld [vmem:[%s306 + $0xf0] sm:$0xff]
        %v392 = vld [vmem:[%s306 + $0xf8] sm:$0xff]
        %v393 = vld [vmem:[%s306 + $0x100] sm:$0xff]
        %v394 = vld [vmem:[%s306 + $0x108] sm:$0xff]
        %v395 = vld [vmem:[%s306 + $0x110] sm:$0xff]
        %v396 = vld [vmem:[%s306 + $0x118] sm:$0xff]
        %v397 = vld [vmem:[%s306 + $0x120] sm:$0xff]
        %v398 = vld [vmem:[%s306 + $0x128] sm:$0xff]
        %v399 = vld [vmem:[%s306 + $0x130] sm:$0xff]
        %v400 = vld [vmem:[%s306 + $0x138] sm:$0xff]
        %v401 = vld [vmem:[%s306 + $0x140] sm:$0xff]
        %v402 = vld [vmem:[%s306 + $0x148] sm:$0xff]
        %v403 = vld [vmem:[%s306 + $0x150] sm:$0xff]
        %v404 = vld [vmem:[%s306 + $0x158] sm:$0xff]
        %v405 = vld [vmem:[%s306 + $0x160] sm:$0xff]
        %v406 = vld [vmem:[%s306 + $0x168] sm:$0xff]
        %v407 = vld [vmem:[%s306 + $0x170] sm:$0xff]
        %v408 = vld [vmem:[%s306 + $0x178] sm:$0xff]
        %v409 = vld [vmem:[%s306 + $0x180] sm:$0xff]
        %v410 = vld [vmem:[%s306 + $0x188] sm:$0xff]
        %v411 = vld [vmem:[%s306 + $0x190] sm:$0xff]
        %v412 = vld [vmem:[%s306 + $0x198] sm:$0xff]
        %v413 = vld [vmem:[%s306 + $0x1a0] sm:$0xff]
        %v414 = vld [vmem:[%s306 + $0x1a8] sm:$0xff]
        %v415 = vld [vmem:[%s306 + $0x1b0] sm:$0xff]
        %v416 = vld [vmem:[%s306 + $0x1b8] sm:$0xff]
        %v417 = vld [vmem:[%s306 + $0x1c0] sm:$0xff]
        %v418 = vld [vmem:[%s306 + $0x1c8] sm:$0xff]
        %v419 = vld [vmem:[%s306 + $0x1d0] sm:$0xff]
        %v420 = vld [vmem:[%s306 + $0x1d8] sm:$0xff]
        %v421 = vld [vmem:[%s306 + $0x1e0] sm:$0xff]
        %v422 = vld [vmem:[%s306 + $0x1e8] sm:$0xff]
        %v423 = vld [vmem:[%s306 + $0x1f0] sm:$0xff]
        %v424 = vld [vmem:[%s306 + $0x1f8] sm:$0xff]
        %v425 = vld [vmem:[%s306 + $0x200] sm:$0xff]
        %v426 = vld [vmem:[%s306 + $0x208] sm:$0xff]
        %v427 = vld [vmem:[%s306 + $0x210] sm:$0xff]
        %v428 = vld [vmem:[%s306 + $0x218] sm:$0xff]
        %v429 = vld [vmem:[%s306 + $0x220] sm:$0xff]
        %v430 = vld [vmem:[%s306 + $0x228] sm:$0xff]
        %v431 = vld [vmem:[%s306 + $0x230] sm:$0xff]
        %v432 = vld [vmem:[%s306 + $0x238] sm:$0xff]
        %v433 = vld [vmem:[%s306 + $0x240] sm:$0xff]
        %v434 = vld [vmem:[%s306 + $0x248] sm:$0xff]
        %v435 = vld [vmem:[%s306 + $0x250] sm:$0xff]
        %v436 = vld [vmem:[%s306 + $0x258] sm:$0xff]
        %v437 = vld [vmem:[%s306 + $0x260] sm:$0xff]
        %v438 = vld [vmem:[%s306 + $0x268] sm:$0xff]
        %v439 = vld [vmem:[%s306 + $0x270] sm:$0xff]
        %v440 = vld [vmem:[%s306 + $0x278] sm:$0xff]
        %v441 = vld [vmem:[%s306 + $0x280] sm:$0xff]
        %v442 = vld [vmem:[%s306 + $0x288] sm:$0xff]
        %v443 = vld [vmem:[%s306 + $0x290] sm:$0xff]
        %v444 = vld [vmem:[%s306 + $0x298] sm:$0xff]
        %v445 = vld [vmem:[%s306 + $0x2a0] sm:$0xff]
        %v446 = vld [vmem:[%s306 + $0x2a8] sm:$0xff]
        %v447 = vld [vmem:[%s306 + $0x2b0] sm:$0xff]
        %v448 = vld [vmem:[%s306 + $0x2b8] sm:$0xff]
        %v449 = vld [vmem:[%s306 + $0x2c0] sm:$0xff]
        %v450 = vld [vmem:[%s306 + $0x2c8] sm:$0xff]
        %v451 = vld [vmem:[%s306 + $0x2d0] sm:$0xff]
        %v452 = vld [vmem:[%s306 + $0x2d8] sm:$0xff]
        %v453 = vld [vmem:[%s306 + $0x2e0] sm:$0xff]
        %v454 = vld [vmem:[%s306 + $0x2e8] sm:$0xff]
        %v455 = vld [vmem:[%s306 + $0x2f0] sm:$0xff]
        %v456 = vld [vmem:[%s306 + $0x2f8] sm:$0xff]
        %v457 = vld [vmem:[%s306 + $0x300] sm:$0xff]
        %v458 = vld [vmem:[%s306 + $0x308] sm:$0xff]
        %v459 = vpack.c.bf16 %v368, %v361
        %v460 = vpack.c.bf16 %v369, %v362
        %v461 = vpack.c.bf16 %v370, %v363
        %v462 = vpack.c.bf16 %v371, %v364
        %v463 = vpack.c.bf16 %v372, %v365
        %v464 = vpack.c.bf16 %v373, %v366
        %v465 = vpack.c.bf16 %v374, %v367
        %v466 = vpack.c.bf16 %v382, %v375
        %v467 = vpack.c.bf16 %v383, %v376
        %v468 = vpack.c.bf16 %v384, %v377
        %v469 = vpack.c.bf16 %v385, %v378
        %v470 = vpack.c.bf16 %v386, %v379
        %v471 = vpack.c.bf16 %v387, %v380
        %v472 = vpack.c.bf16 %v388, %v381
        %v473 = vpack.c.bf16 %v396, %v389
        %v474 = vpack.c.bf16 %v397, %v390
        %v475 = vpack.c.bf16 %v398, %v391
        %v476 = vpack.c.bf16 %v399, %v392
        %v477 = vpack.c.bf16 %v400, %v393
        %v478 = vpack.c.bf16 %v401, %v394
        %v479 = vpack.c.bf16 %v402, %v395
        %v480 = vpack.c.bf16 %v410, %v403
        %v481 = vpack.c.bf16 %v411, %v404
        %v482 = vpack.c.bf16 %v412, %v405
        %v483 = vpack.c.bf16 %v413, %v406
        %v484 = vpack.c.bf16 %v414, %v407
        %v485 = vpack.c.bf16 %v415, %v408
        %v486 = vpack.c.bf16 %v416, %v409
        %v487 = vpack.c.bf16 %v424, %v417
        %v488 = vpack.c.bf16 %v425, %v418
        %v489 = vpack.c.bf16 %v426, %v419
        %v490 = vpack.c.bf16 %v427, %v420
        %v491 = vpack.c.bf16 %v428, %v421
        %v492 = vpack.c.bf16 %v429, %v422
        %v493 = vpack.c.bf16 %v430, %v423
        %v494 = vpack.c.bf16 %v438, %v431
        %v495 = vpack.c.bf16 %v439, %v432
        %v496 = vpack.c.bf16 %v440, %v433
        %v497 = vpack.c.bf16 %v441, %v434
        %v498 = vpack.c.bf16 %v442, %v435
        %v499 = vpack.c.bf16 %v443, %v436
        %v500 = vpack.c.bf16 %v444, %v437
        %v501 = vpack.c.bf16 %v452, %v445
        %v502 = vpack.c.bf16 %v453, %v446
        %v503 = vpack.c.bf16 %v454, %v447
        %v504 = vpack.c.bf16 %v455, %v448
        %v505 = vpack.c.bf16 %v456, %v449
        %v506 = vpack.c.bf16 %v457, %v450
        %v507 = vpack.c.bf16 %v458, %v451
        %v508 = vld [vmem:[#allocation5] sm:$0xf]
        %v509 = vld [vmem:[#allocation5 + $0x4] sm:$0xf]
        %v510 = vld [vmem:[#allocation5 + $0x8] sm:$0xf]
        %v511 = vld [vmem:[#allocation5 + $0xc] sm:$0xf]
        %v512 = vld [vmem:[#allocation5 + $0x10] sm:$0xf]
        %v513 = vld [vmem:[#allocation5 + $0x14] sm:$0xf]
        %v514 = vld [vmem:[#allocation5 + $0x18] sm:$0xf]
        %v515 = vld [vmem:[#allocation5 + $0x1c] sm:$0xf]
        %v516 = vld [vmem:[#allocation5 + $0x20] sm:$0xf]
        %v517 = vld [vmem:[#allocation5 + $0x24] sm:$0xf]
        %v518 = vld [vmem:[#allocation5 + $0x28] sm:$0xf]
        %v519 = vld [vmem:[#allocation5 + $0x2c] sm:$0xf]
        %v520 = vld [vmem:[#allocation5 + $0x30] sm:$0xf]
        %v521 = vld [vmem:[#allocation5 + $0x34] sm:$0xf]
        %v522 = vld [vmem:[#allocation5 + $0x38] sm:$0xf]
        %v523 = vld [vmem:[#allocation5 + $0x3c] sm:$0xf]
        %v524 = vld [vmem:[#allocation5 + $0x40] sm:$0xf]
        %v525 = vld [vmem:[#allocation5 + $0x44] sm:$0xf]
        %v526 = vld [vmem:[#allocation5 + $0x48] sm:$0xf]
        %v527 = vld [vmem:[#allocation5 + $0x4c] sm:$0xf]
        %v528 = vld [vmem:[#allocation5 + $0x50] sm:$0xf]
        %v529 = vld [vmem:[#allocation5 + $0x54] sm:$0xf]
        %v530 = vld [vmem:[#allocation5 + $0x58] sm:$0xf]
        %v531 = vld [vmem:[#allocation5 + $0x5c] sm:$0xf]
        %v532 = vld [vmem:[#allocation5 + $0x60] sm:$0xf]
        %v533 = vld [vmem:[#allocation5 + $0x64] sm:$0xf]
        %v534 = vld [vmem:[#allocation5 + $0x68] sm:$0xf]
        %v535 = vld [vmem:[#allocation5 + $0x6c] sm:$0xf]
        %v536 = vld [vmem:[#allocation5 + $0x70] sm:$0xf]
        %v537 = vld [vmem:[#allocation5 + $0x74] sm:$0xf]
        %v538 = vld [vmem:[#allocation5 + $0x78] sm:$0xf]
        %v539 = vld [vmem:[#allocation5 + $0x7c] sm:$0xf]
        %v540 = vld [vmem:[#allocation5 + $0x80] sm:$0xf]
        %v541 = vld [vmem:[#allocation5 + $0x84] sm:$0xf]
        %v542 = vld [vmem:[#allocation5 + $0x88] sm:$0xf]
        %v543 = vld [vmem:[#allocation5 + $0x8c] sm:$0xf]
        %v544 = vld [vmem:[#allocation5 + $0x90] sm:$0xf]
        %v545 = vld [vmem:[#allocation5 + $0x94] sm:$0xf]
        %v546 = vld [vmem:[#allocation5 + $0x98] sm:$0xf]
        %v547 = vld [vmem:[#allocation5 + $0x9c] sm:$0xf]
        %v548 = vld [vmem:[#allocation5 + $0xa0] sm:$0xf]
        %v549 = vld [vmem:[#allocation5 + $0xa4] sm:$0xf]
        %v550 = vld [vmem:[#allocation5 + $0xa8] sm:$0xf]
        %v551 = vld [vmem:[#allocation5 + $0xac] sm:$0xf]
        %v552 = vld [vmem:[#allocation5 + $0xb0] sm:$0xf]
        %v553 = vld [vmem:[#allocation5 + $0xb4] sm:$0xf]
        %v554 = vld [vmem:[#allocation5 + $0xb8] sm:$0xf]
        %v555 = vld [vmem:[#allocation5 + $0xbc] sm:$0xf]
        %v556 = vld [vmem:[#allocation5 + $0xc0] sm:$0xf]
        %v557 = vld [vmem:[#allocation5 + $0xc4] sm:$0xf]
        %v558 = vld [vmem:[#allocation5 + $0xc8] sm:$0xf]
        %v559 = vld [vmem:[#allocation5 + $0xcc] sm:$0xf]
        %v560 = vld [vmem:[#allocation5 + $0xd0] sm:$0xf]
        %v561 = vld [vmem:[#allocation5 + $0xd4] sm:$0xf]
        %v562 = vld [vmem:[#allocation5 + $0xd8] sm:$0xf]
        %v563 = vld [vmem:[#allocation5 + $0xdc] sm:$0xf]
        %v564 = vld [vmem:[#allocation5 + $0xe0] sm:$0xf]
        %v565 = vld [vmem:[#allocation5 + $0xe4] sm:$0xf]
        %v566 = vld [vmem:[#allocation5 + $0xe8] sm:$0xf]
        %v567 = vld [vmem:[#allocation5 + $0xec] sm:$0xf]
        %v568 = vld [vmem:[#allocation5 + $0xf0] sm:$0xf]
        %v569 = vld [vmem:[#allocation5 + $0xf4] sm:$0xf]
        %v570 = vld [vmem:[#allocation5 + $0xf8] sm:$0xf]
        %v571 = vld [vmem:[#allocation5 + $0xfc] sm:$0xf]
        %v572 = vld [vmem:[#allocation5 + $0x100] sm:$0xf]
        %v573 = vld [vmem:[#allocation5 + $0x104] sm:$0xf]
        %v574 = vld [vmem:[#allocation5 + $0x108] sm:$0xf]
        %v575 = vld [vmem:[#allocation5 + $0x10c] sm:$0xf]
        %v576 = vld [vmem:[#allocation5 + $0x110] sm:$0xf]
        %v577 = vld [vmem:[#allocation5 + $0x114] sm:$0xf]
        %v578 = vld [vmem:[#allocation5 + $0x118] sm:$0xf]
        %v579 = vld [vmem:[#allocation5 + $0x11c] sm:$0xf]
        %v580 = vld [vmem:[#allocation5 + $0x120] sm:$0xf]
        %v581 = vld [vmem:[#allocation5 + $0x124] sm:$0xf]
        %v582 = vld [vmem:[#allocation5 + $0x128] sm:$0xf]
        %v583 = vld [vmem:[#allocation5 + $0x12c] sm:$0xf]
        %v584 = vld [vmem:[#allocation5 + $0x130] sm:$0xf]
        %v585 = vld [vmem:[#allocation5 + $0x134] sm:$0xf]
        %v586 = vld [vmem:[#allocation5 + $0x138] sm:$0xf]
        %v587 = vld [vmem:[#allocation5 + $0x13c] sm:$0xf]
        %v588 = vld [vmem:[#allocation5 + $0x140] sm:$0xf]
        %v589 = vld [vmem:[#allocation5 + $0x144] sm:$0xf]
        %v590 = vld [vmem:[#allocation5 + $0x148] sm:$0xf]
        %v591 = vld [vmem:[#allocation5 + $0x14c] sm:$0xf]
        %v592 = vld [vmem:[#allocation5 + $0x150] sm:$0xf]
        %v593 = vld [vmem:[#allocation5 + $0x154] sm:$0xf]
        %v594 = vld [vmem:[#allocation5 + $0x158] sm:$0xf]
        %v595 = vld [vmem:[#allocation5 + $0x15c] sm:$0xf]
        %v596 = vld [vmem:[#allocation5 + $0x160] sm:$0xf]
        %v597 = vld [vmem:[#allocation5 + $0x164] sm:$0xf]
        %v598 = vld [vmem:[#allocation5 + $0x168] sm:$0xf]
        %v599 = vld [vmem:[#allocation5 + $0x16c] sm:$0xf]
        %v600 = vld [vmem:[#allocation5 + $0x170] sm:$0xf]
        %v601 = vld [vmem:[#allocation5 + $0x174] sm:$0xf]
        %v602 = vld [vmem:[#allocation5 + $0x178] sm:$0xf]
        %v603 = vld [vmem:[#allocation5 + $0x17c] sm:$0xf]
        %v604 = vld [vmem:[#allocation5 + $0x180] sm:$0xf]
        %v605 = vld [vmem:[#allocation5 + $0x184] sm:$0xf]
        %v606 = vld [vmem:[%s2] sm:$0x1]
        %v608 = vlaneseq
        %v609 = vshrl.u32 %v608, 7
        %v610 = vsub.s32 0, %v609
        %v611 = vrot.slane %v606, %v610
        %v711 = vunpack.c.l.b16 %v508
        %v712 = vunpack.c.l.b16 %v509
        %v713 = vunpack.c.l.b16 %v510
        %v714 = vunpack.c.l.b16 %v511
        %v715 = vunpack.c.l.b16 %v512
        %v716 = vunpack.c.l.b16 %v513
        %v717 = vunpack.c.l.b16 %v514
        %v718 = vunpack.c.l.b16 %v515
        %v719 = vunpack.c.l.b16 %v516
        %v720 = vunpack.c.l.b16 %v517
        %v721 = vunpack.c.l.b16 %v518
        %v722 = vunpack.c.l.b16 %v519
        %v723 = vunpack.c.l.b16 %v520
        %v724 = vunpack.c.l.b16 %v521
        %v725 = vunpack.c.l.b16 %v522
        %v726 = vunpack.c.l.b16 %v523
        %v727 = vunpack.c.l.b16 %v524
        %v728 = vunpack.c.l.b16 %v525
        %v729 = vunpack.c.l.b16 %v526
        %v730 = vunpack.c.l.b16 %v527
        %v731 = vunpack.c.l.b16 %v528
        %v732 = vunpack.c.l.b16 %v529
        %v733 = vunpack.c.l.b16 %v530
        %v734 = vunpack.c.l.b16 %v531
        %v735 = vunpack.c.l.b16 %v532
        %v736 = vunpack.c.l.b16 %v533
        %v737 = vunpack.c.l.b16 %v534
        %v738 = vunpack.c.l.b16 %v535
        %v739 = vunpack.c.l.b16 %v536
        %v740 = vunpack.c.l.b16 %v537
        %v741 = vunpack.c.l.b16 %v538
        %v742 = vunpack.c.l.b16 %v539
        %v743 = vunpack.c.l.b16 %v540
        %v744 = vunpack.c.l.b16 %v541
        %v745 = vunpack.c.l.b16 %v542
        %v746 = vunpack.c.l.b16 %v543
        %v747 = vunpack.c.l.b16 %v544
        %v748 = vunpack.c.l.b16 %v545
        %v749 = vunpack.c.l.b16 %v546
        %v750 = vunpack.c.l.b16 %v547
        %v751 = vunpack.c.l.b16 %v548
        %v752 = vunpack.c.l.b16 %v549
        %v753 = vunpack.c.l.b16 %v550
        %v754 = vunpack.c.l.b16 %v551
        %v755 = vunpack.c.l.b16 %v552
        %v756 = vunpack.c.l.b16 %v553
        %v757 = vunpack.c.l.b16 %v554
        %v758 = vunpack.c.l.b16 %v555
        %v759 = vunpack.c.l.b16 %v556
        %v760 = vunpack.c.l.b16 %v557
        %v761 = vunpack.c.l.b16 %v558
        %v762 = vunpack.c.l.b16 %v559
        %v763 = vunpack.c.l.b16 %v560
        %v764 = vunpack.c.l.b16 %v561
        %v765 = vunpack.c.l.b16 %v562
        %v766 = vunpack.c.l.b16 %v563
        %v767 = vunpack.c.l.b16 %v564
        %v768 = vunpack.c.l.b16 %v565
        %v769 = vunpack.c.l.b16 %v566
        %v770 = vunpack.c.l.b16 %v567
        %v771 = vunpack.c.l.b16 %v568
        %v772 = vunpack.c.l.b16 %v569
        %v773 = vunpack.c.l.b16 %v570
        %v774 = vunpack.c.l.b16 %v571
        %v775 = vunpack.c.l.b16 %v572
        %v776 = vunpack.c.l.b16 %v573
        %v777 = vunpack.c.l.b16 %v574
        %v778 = vunpack.c.l.b16 %v575
        %v779 = vunpack.c.l.b16 %v576
        %v780 = vunpack.c.l.b16 %v577
        %v781 = vunpack.c.l.b16 %v578
        %v782 = vunpack.c.l.b16 %v579
        %v783 = vunpack.c.l.b16 %v580
        %v784 = vunpack.c.l.b16 %v581
        %v785 = vunpack.c.l.b16 %v582
        %v786 = vunpack.c.l.b16 %v583
        %v787 = vunpack.c.l.b16 %v584
        %v788 = vunpack.c.l.b16 %v585
        %v789 = vunpack.c.l.b16 %v586
        %v790 = vunpack.c.l.b16 %v587
        %v791 = vunpack.c.l.b16 %v588
        %v792 = vunpack.c.l.b16 %v589
        %v793 = vunpack.c.l.b16 %v590
        %v794 = vunpack.c.l.b16 %v591
        %v795 = vunpack.c.l.b16 %v592
        %v796 = vunpack.c.l.b16 %v593
        %v797 = vunpack.c.l.b16 %v594
        %v798 = vunpack.c.l.b16 %v595
        %v799 = vunpack.c.l.b16 %v596
        %v800 = vunpack.c.l.b16 %v597
        %v801 = vunpack.c.l.b16 %v598
        %v802 = vunpack.c.l.b16 %v599
        %v803 = vunpack.c.l.b16 %v600
        %v804 = vunpack.c.l.b16 %v601
        %v805 = vunpack.c.l.b16 %v602
        %v806 = vunpack.c.l.b16 %v603
        %v807 = vunpack.c.l.b16 %v604
        %v808 = vunpack.c.l.b16 %v605
        %v809 = vpack.c.b16 %v712, %v711
        %v810 = vpack.c.b16 %v714, %v713
        %v811 = vpack.c.b16 %v716, %v715
        %v812 = vpack.c.b16 %v718, %v717
        %v813 = vpack.c.b16 %v720, %v719
        %v814 = vpack.c.b16 %v722, %v721
        %v815 = vpack.c.b16 %v724, %v723
        %v816 = vpack.c.b16 %v726, %v725
        %v817 = vpack.c.b16 %v728, %v727
        %v818 = vpack.c.b16 %v730, %v729
        %v819 = vpack.c.b16 %v732, %v731
        %v820 = vpack.c.b16 %v734, %v733
        %v821 = vpack.c.b16 %v736, %v735
        %v822 = vpack.c.b16 %v738, %v737
        %v823 = vpack.c.b16 %v740, %v739
        %v824 = vpack.c.b16 %v742, %v741
        %v825 = vpack.c.b16 %v744, %v743
        %v826 = vpack.c.b16 %v746, %v745
        %v827 = vpack.c.b16 %v748, %v747
        %v828 = vpack.c.b16 %v750, %v749
        %v829 = vpack.c.b16 %v752, %v751
        %v830 = vpack.c.b16 %v754, %v753
        %v831 = vpack.c.b16 %v756, %v755
        %v832 = vpack.c.b16 %v758, %v757
        %v833 = vpack.c.b16 %v760, %v759
        %v834 = vpack.c.b16 %v762, %v761
        %v835 = vpack.c.b16 %v764, %v763
        %v836 = vpack.c.b16 %v766, %v765
        %v837 = vpack.c.b16 %v768, %v767
        %v838 = vpack.c.b16 %v770, %v769
        %v839 = vpack.c.b16 %v772, %v771
        %v840 = vpack.c.b16 %v774, %v773
        %v841 = vpack.c.b16 %v776, %v775
        %v842 = vpack.c.b16 %v778, %v777
        %v843 = vpack.c.b16 %v780, %v779
        %v844 = vpack.c.b16 %v782, %v781
        %v845 = vpack.c.b16 %v784, %v783
        %v846 = vpack.c.b16 %v786, %v785
        %v847 = vpack.c.b16 %v788, %v787
        %v848 = vpack.c.b16 %v790, %v789
        %v849 = vpack.c.b16 %v792, %v791
        %v850 = vpack.c.b16 %v794, %v793
        %v851 = vpack.c.b16 %v796, %v795
        %v852 = vpack.c.b16 %v798, %v797
        %v853 = vpack.c.b16 %v800, %v799
        %v854 = vpack.c.b16 %v802, %v801
        %v855 = vpack.c.b16 %v804, %v803
        %v856 = vpack.c.b16 %v806, %v805
        %v857 = vpack.c.b16 %v808, %v807
        %vm907 = vcmask 130048
        %v909 = vsel %vm907, %v465, 0
        %v912 = vsel %vm907, %v472, 0
        %v915 = vsel %vm907, %v479, 0
        %v918 = vsel %vm907, %v486, 0
        %v921 = vsel %vm907, %v493, 0
        %v924 = vsel %vm907, %v500, 0
        %v927 = vsel %vm907, %v507, 0
        %929 = vmatprep.subr.bf16.mxu0 0
        %930 = vmatpush1.bf16.msra.mxu0 %v809
        %931 = vmatprep.subr.bf16.mxu0 0
        %932 = vmatpush1.bf16.msra.mxu0 %v810
        %933 = vmatprep.subr.bf16.mxu0 0
        %934 = vmatpush1.bf16.msra.mxu0 %v811
        %935 = vmatprep.subr.bf16.mxu0 0
        %936 = vmatpush1.bf16.msra.mxu0 %v812
        %937 = vmatprep.subr.bf16.mxu0 0
        %938 = vmatpush1.bf16.msra.mxu0 %v813
        %939 = vmatprep.subr.bf16.mxu0 0
        %940 = vmatpush1.bf16.msra.mxu0 %v814
        %941 = vmatprep.subr.bf16.mxu0 0
        %942 = vmatpush1.bf16.msra.mxu0 %v815
        %943 = vmatprep.subr.bf16.mxu0 0
        %944 = vmatpush1.bf16.msra.mxu0 %v816
        %945 = vmatprep.subr.bf16.mxu0 0
        %946 = vmatpush1.bf16.msra.mxu0 %v817
        %947 = vmatprep.subr.bf16.mxu0 0
        %948 = vmatpush1.bf16.msra.mxu0 %v818
        %949 = vmatprep.subr.bf16.mxu0 0
        %950 = vmatpush1.bf16.msra.mxu0 %v819
        %951 = vmatprep.subr.bf16.mxu0 0
        %952 = vmatpush1.bf16.msra.mxu0 %v820
        %953 = vmatprep.subr.bf16.mxu0 0
        %954 = vmatpush1.bf16.msra.mxu0 %v821
        %955 = vmatprep.subr.bf16.mxu0 0
        %956 = vmatpush1.bf16.msra.mxu0 %v822
        %957 = vmatprep.subr.bf16.mxu0 0
        %958 = vmatpush1.bf16.msra.mxu0 %v823
        %959 = vmatprep.subr.bf16.mxu0 0
        %960 = vmatpush1.bf16.msra.mxu0 %v824
        %961 = vmatprep.mubr.bf16.mxu0 %v460
        %962 = vmatmul.mubr.bf16.gmra.mrb[0].mxu0 %v459
        %v963 = vpop.f32.mrb[0].mxu0
        %v964 = vadd.f32 %v611, %v963
        %v965 = vpop.f32.mrb[0].mxu0
        %v966 = vpop.f32.mrb[0].mxu0
        %v967 = vadd.f32 %v611, %v966
        %v968 = vpop.f32.mrb[0].mxu0
        %969 = vmatprep.mubr.bf16.mxu0 %v467
        %970 = vmatmul.mubr.bf16.gmra.mrb[0].mxu0 %v466
        %v971 = vpop.f32.mrb[0].mxu0
        %v972 = vadd.f32 %v611, %v971
        %v973 = vpop.f32.mrb[0].mxu0
        %v974 = vpop.f32.mrb[0].mxu0
        %v975 = vadd.f32 %v611, %v974
        %v976 = vpop.f32.mrb[0].mxu0
        %977 = vmatprep.mubr.bf16.mxu0 %v474
        %978 = vmatmul.mubr.bf16.gmra.mrb[0].mxu0 %v473
        %v979 = vpop.f32.mrb[0].mxu0
        %v980 = vadd.f32 %v611, %v979
        %v981 = vpop.f32.mrb[0].mxu0
        %v982 = vpop.f32.mrb[0].mxu0
        %v983 = vadd.f32 %v611, %v982
        %v984 = vpop.f32.mrb[0].mxu0
        %985 = vmatprep.mubr.bf16.mxu0 %v481
        %986 = vmatmul.mubr.bf16.gmra.mrb[0].mxu0 %v480
        %v987 = vpop.f32.mrb[0].mxu0
        %v988 = vadd.f32 %v611, %v987
        %v989 = vpop.f32.mrb[0].mxu0
        %v990 = vpop.f32.mrb[0].mxu0
        %v991 = vadd.f32 %v611, %v990
        %v992 = vpop.f32.mrb[0].mxu0
        %993 = vmatprep.mubr.bf16.mxu0 %v488
        %994 = vmatmul.mubr.bf16.gmra.mrb[0].mxu0 %v487
        %v995 = vpop.f32.mrb[0].mxu0
        %v996 = vadd.f32 %v611, %v995
        %v997 = vpop.f32.mrb[0].mxu0
        %v998 = vpop.f32.mrb[0].mxu0
        %v999 = vadd.f32 %v611, %v998
        %v1000 = vpop.f32.mrb[0].mxu0
        %1001 = vmatprep.mubr.bf16.mxu0 %v495
        %1002 = vmatmul.mubr.bf16.gmra.mrb[0].mxu0 %v494
        %v1003 = vpop.f32.mrb[0].mxu0
        %v1004 = vadd.f32 %v611, %v1003
        %v1005 = vpop.f32.mrb[0].mxu0
        %v1006 = vpop.f32.mrb[0].mxu0
        %v1007 = vadd.f32 %v611, %v1006
        %v1008 = vpop.f32.mrb[0].mxu0
        %1009 = vmatprep.mubr.bf16.mxu0 %v502
        %1010 = vmatmul.mubr.bf16.gmra.mrb[0].mxu0 %v501
        %v1011 = vpop.f32.mrb[0].mxu0
        %v1012 = vadd.f32 %v611, %v1011
        %v1013 = vpop.f32.mrb[0].mxu0
        %v1014 = vpop.f32.mrb[0].mxu0
        %v1015 = vadd.f32 %v611, %v1014
        %v1016 = vpop.f32.mrb[0].mxu0
        %1017 = vdwg.mxu0
        %1018 = vmatprep.subr.bf16.mxu0 0
        %1019 = vmatpush1.bf16.msra.mxu0 %v825
        %1020 = vmatprep.subr.bf16.mxu0 0
        %1021 = vmatpush1.bf16.msra.mxu0 %v826
        %1022 = vmatprep.subr.bf16.mxu0 0
        %1023 = vmatpush1.bf16.msra.mxu0 %v827
        %1024 = vmatprep.subr.bf16.mxu0 0
        %1025 = vmatpush1.bf16.msra.mxu0 %v828
        %1026 = vmatprep.subr.bf16.mxu0 0
        %1027 = vmatpush1.bf16.msra.mxu0 %v829
        %1028 = vmatprep.subr.bf16.mxu0 0
        %1029 = vmatpush1.bf16.msra.mxu0 %v830
        %1030 = vmatprep.subr.bf16.mxu0 0
        %1031 = vmatpush1.bf16.msra.mxu0 %v831
        %1032 = vmatprep.subr.bf16.mxu0 0
        %1033 = vmatpush1.bf16.msra.mxu0 %v832
        %1034 = vmatprep.subr.bf16.mxu0 0
        %1035 = vmatpush1.bf16.msra.mxu0 %v833
        %1036 = vmatprep.subr.bf16.mxu0 0
        %1037 = vmatpush1.bf16.msra.mxu0 %v834
        %1038 = vmatprep.subr.bf16.mxu0 0
        %1039 = vmatpush1.bf16.msra.mxu0 %v835
        %1040 = vmatprep.subr.bf16.mxu0 0
        %1041 = vmatpush1.bf16.msra.mxu0 %v836
        %1042 = vmatprep.subr.bf16.mxu0 0
        %1043 = vmatpush1.bf16.msra.mxu0 %v837
        %1044 = vmatprep.subr.bf16.mxu0 0
        %1045 = vmatpush1.bf16.msra.mxu0 %v838
        %1046 = vmatprep.subr.bf16.mxu0 0
        %1047 = vmatpush1.bf16.msra.mxu0 %v839
        %1048 = vmatprep.subr.bf16.mxu0 0
        %1049 = vmatpush1.bf16.msra.mxu0 %v840
        %1050 = vmatprep.mubr.bf16.mxu0 %v462
        %1051 = vmatmul.mubr.bf16.gmra.mrb[0].mxu0 %v461
        %v1052 = vpop.f32.mrb[0].mxu0
        %v1053 = vadd.f32 %v964, %v1052
        %v1054 = vpop.f32.mrb[0].mxu0
        %v1055 = vpop.f32.mrb[0].mxu0
        %v1056 = vadd.f32 %v967, %v1055
        %v1057 = vpop.f32.mrb[0].mxu0
        %1058 = vmatprep.mubr.bf16.mxu0 %v469
        %1059 = vmatmul.mubr.bf16.gmra.mrb[0].mxu0 %v468
        %v1060 = vpop.f32.mrb[0].mxu0
        %v1061 = vadd.f32 %v972, %v1060
        %v1062 = vpop.f32.mrb[0].mxu0
        %v1063 = vpop.f32.mrb[0].mxu0
        %v1064 = vadd.f32 %v975, %v1063
        %v1065 = vpop.f32.mrb[0].mxu0
        %1066 = vmatprep.mubr.bf16.mxu0 %v476
        %1067 = vmatmul.mubr.bf16.gmra.mrb[0].mxu0 %v475
        %v1068 = vpop.f32.mrb[0].mxu0
        %v1069 = vadd.f32 %v980, %v1068
        %v1070 = vpop.f32.mrb[0].mxu0
        %v1071 = vpop.f32.mrb[0].mxu0
        %v1072 = vadd.f32 %v983, %v1071
        %v1073 = vpop.f32.mrb[0].mxu0
        %1074 = vmatprep.mubr.bf16.mxu0 %v483
        %1075 = vmatmul.mubr.bf16.gmra.mrb[0].mxu0 %v482
        %v1076 = vpop.f32.mrb[0].mxu0
        %v1077 = vadd.f32 %v988, %v1076
        %v1078 = vpop.f32.mrb[0].mxu0
        %v1079 = vpop.f32.mrb[0].mxu0
        %v1080 = vadd.f32 %v991, %v1079
        %v1081 = vpop.f32.mrb[0].mxu0
        %1082 = vmatprep.mubr.bf16.mxu0 %v490
        %1083 = vmatmul.mubr.bf16.gmra.mrb[0].mxu0 %v489
        %v1084 = vpop.f32.mrb[0].mxu0
        %v1085 = vadd.f32 %v996, %v1084
        %v1086 = vpop.f32.mrb[0].mxu0
        %v1087 = vpop.f32.mrb[0].mxu0
        %v1088 = vadd.f32 %v999, %v1087
        %v1089 = vpop.f32.mrb[0].mxu0
        %1090 = vmatprep.mubr.bf16.mxu0 %v497
        %1091 = vmatmul.mubr.bf16.gmra.mrb[0].mxu0 %v496
        %v1092 = vpop.f32.mrb[0].mxu0
        %v1093 = vadd.f32 %v1004, %v1092
        %v1094 = vpop.f32.mrb[0].mxu0
        %v1095 = vpop.f32.mrb[0].mxu0
        %v1096 = vadd.f32 %v1007, %v1095
        %v1097 = vpop.f32.mrb[0].mxu0
        %1098 = vmatprep.mubr.bf16.mxu0 %v504
        %1099 = vmatmul.mubr.bf16.gmra.mrb[0].mxu0 %v503
        %v1100 = vpop.f32.mrb[0].mxu0
        %v1101 = vadd.f32 %v1012, %v1100
        %v1102 = vpop.f32.mrb[0].mxu0
        %v1103 = vpop.f32.mrb[0].mxu0
        %v1104 = vadd.f32 %v1015, %v1103
        %v1105 = vpop.f32.mrb[0].mxu0
        %1106 = vdwg.mxu0
        %1107 = vmatprep.subr.bf16.mxu0 0
        %1108 = vmatpush1.bf16.msra.mxu0 %v841
        %1109 = vmatprep.subr.bf16.mxu0 0
        %1110 = vmatpush1.bf16.msra.mxu0 %v842
        %1111 = vmatprep.subr.bf16.mxu0 0
        %1112 = vmatpush1.bf16.msra.mxu0 %v843
        %1113 = vmatprep.subr.bf16.mxu0 0
        %1114 = vmatpush1.bf16.msra.mxu0 %v844
        %1115 = vmatprep.subr.bf16.mxu0 0
        %1116 = vmatpush1.bf16.msra.mxu0 %v845
        %1117 = vmatprep.subr.bf16.mxu0 0
        %1118 = vmatpush1.bf16.msra.mxu0 %v846
        %1119 = vmatprep.subr.bf16.mxu0 0
        %1120 = vmatpush1.bf16.msra.mxu0 %v847
        %1121 = vmatprep.subr.bf16.mxu0 0
        %1122 = vmatpush1.bf16.msra.mxu0 %v848
        %1123 = vmatprep.subr.bf16.mxu0 0
        %1124 = vmatpush1.bf16.msra.mxu0 %v849
        %1125 = vmatprep.subr.bf16.mxu0 0
        %1126 = vmatpush1.bf16.msra.mxu0 %v850
        %1127 = vmatprep.subr.bf16.mxu0 0
        %1128 = vmatpush1.bf16.msra.mxu0 %v851
        %1129 = vmatprep.subr.bf16.mxu0 0
        %1130 = vmatpush1.bf16.msra.mxu0 %v852
        %1131 = vmatprep.subr.bf16.mxu0 0
        %1132 = vmatpush1.bf16.msra.mxu0 %v853
        %1133 = vmatprep.subr.bf16.mxu0 0
        %1134 = vmatpush1.bf16.msra.mxu0 %v854
        %1135 = vmatprep.subr.bf16.mxu0 0
        %1136 = vmatpush1.bf16.msra.mxu0 %v855
        %1137 = vmatprep.subr.bf16.mxu0 0
        %1138 = vmatpush1.bf16.msra.mxu0 %v856
        %1139 = vmatprep.mubr.bf16.mxu0 %v464
        %1140 = vmatmul.mubr.bf16.gmra.mrb[0].mxu0 %v463
        %v1141 = vpop.f32.mrb[0].mxu0
        %v1142 = vadd.f32 %v1053, %v1141
        %v1143 = vpop.f32.mrb[0].mxu0
        %v1144 = vpop.f32.mrb[0].mxu0
        %v1145 = vadd.f32 %v1056, %v1144
        %v1146 = vpop.f32.mrb[0].mxu0
        %1147 = vmatprep.mubr.bf16.mxu0 %v471
        %1148 = vmatmul.mubr.bf16.gmra.mrb[0].mxu0 %v470
        %v1149 = vpop.f32.mrb[0].mxu0
        %v1150 = vadd.f32 %v1061, %v1149
        %v1151 = vpop.f32.mrb[0].mxu0
        %v1152 = vpop.f32.mrb[0].mxu0
        %v1153 = vadd.f32 %v1064, %v1152
        %v1154 = vpop.f32.mrb[0].mxu0
        %1155 = vmatprep.mubr.bf16.mxu0 %v478
        %1156 = vmatmul.mubr.bf16.gmra.mrb[0].mxu0 %v477
        %v1157 = vpop.f32.mrb[0].mxu0
        %v1158 = vadd.f32 %v1069, %v1157
        %v1159 = vpop.f32.mrb[0].mxu0
        %v1160 = vpop.f32.mrb[0].mxu0
        %v1161 = vadd.f32 %v1072, %v1160
        %v1162 = vpop.f32.mrb[0].mxu0
        %1163 = vmatprep.mubr.bf16.mxu0 %v485
        %1164 = vmatmul.mubr.bf16.gmra.mrb[0].mxu0 %v484
        %v1165 = vpop.f32.mrb[0].mxu0
        %v1166 = vadd.f32 %v1077, %v1165
        %v1167 = vpop.f32.mrb[0].mxu0
        %v1168 = vpop.f32.mrb[0].mxu0
        %v1169 = vadd.f32 %v1080, %v1168
        %v1170 = vpop.f32.mrb[0].mxu0
        %1171 = vmatprep.mubr.bf16.mxu0 %v492
        %1172 = vmatmul.mubr.bf16.gmra.mrb[0].mxu0 %v491
        %v1173 = vpop.f32.mrb[0].mxu0
        %v1174 = vadd.f32 %v1085, %v1173
        %v1175 = vpop.f32.mrb[0].mxu0
        %v1176 = vpop.f32.mrb[0].mxu0
        %v1177 = vadd.f32 %v1088, %v1176
        %v1178 = vpop.f32.mrb[0].mxu0
        %1179 = vmatprep.mubr.bf16.mxu0 %v499
        %1180 = vmatmul.mubr.bf16.gmra.mrb[0].mxu0 %v498
        %v1181 = vpop.f32.mrb[0].mxu0
        %v1182 = vadd.f32 %v1093, %v1181
        %v1183 = vpop.f32.mrb[0].mxu0
        %v1184 = vpop.f32.mrb[0].mxu0
        %v1185 = vadd.f32 %v1096, %v1184
        %v1186 = vpop.f32.mrb[0].mxu0
        %1187 = vmatprep.mubr.bf16.mxu0 %v506
        %1188 = vmatmul.mubr.bf16.gmra.mrb[0].mxu0 %v505
        %v1189 = vpop.f32.mrb[0].mxu0
        %v1190 = vadd.f32 %v1101, %v1189
        %v1191 = vpop.f32.mrb[0].mxu0
        %v1192 = vpop.f32.mrb[0].mxu0
        %v1193 = vadd.f32 %v1104, %v1192
        %v1194 = vpop.f32.mrb[0].mxu0
        %1195 = vdwg.mxu0
        %1196 = vmatprep.subr.bf16.mxu0 0
        %1197 = vmatpush1.bf16.msra.mxu0 %v857
        %1198 = vmatprep.subr.bf16.mxu0 0
        %1199 = vmatpush1.bf16.msra.mxu0 0
        %1200 = vmatprep.subr.bf16.mxu0 0
        %1201 = vmatpush1.bf16.msra.mxu0 0
        %1202 = vmatprep.subr.bf16.mxu0 0
        %1203 = vmatpush1.bf16.msra.mxu0 0
        %1204 = vmatprep.subr.bf16.mxu0 0
        %1205 = vmatpush1.bf16.msra.mxu0 0
        %1206 = vmatprep.subr.bf16.mxu0 0
        %1207 = vmatpush1.bf16.msra.mxu0 0
        %1208 = vmatprep.subr.bf16.mxu0 0
        %1209 = vmatpush1.bf16.msra.mxu0 0
        %1210 = vmatprep.subr.bf16.mxu0 0
        %1211 = vmatpush1.bf16.msra.mxu0 0
        %1212 = vmatprep.subr.bf16.mxu0 0
        %1213 = vmatpush1.bf16.msra.mxu0 0
        %1214 = vmatprep.subr.bf16.mxu0 0
        %1215 = vmatpush1.bf16.msra.mxu0 0
        %1216 = vmatprep.subr.bf16.mxu0 0
        %1217 = vmatpush1.bf16.msra.mxu0 0
        %1218 = vmatprep.subr.bf16.mxu0 0
        %1219 = vmatpush1.bf16.msra.mxu0 0
        %1220 = vmatprep.subr.bf16.mxu0 0
        %1221 = vmatpush1.bf16.msra.mxu0 0
        %1222 = vmatprep.subr.bf16.mxu0 0
        %1223 = vmatpush1.bf16.msra.mxu0 0
        %1224 = vmatprep.subr.bf16.mxu0 0
        %1225 = vmatpush1.bf16.msra.mxu0 0
        %1226 = vmatprep.subr.bf16.mxu0 0
        %1227 = vmatpush1.bf16.msra.mxu0 0
        %1228 = vmatprep.mubr.bf16.mxu0 0
        %1229 = vmatmul.mubr.bf16.gmra.mrb[0].mxu0 %v909
        %v1230 = vpop.f32.mrb[0].mxu0
        %v1231 = vadd.f32 %v1142, %v1230
        %v1232 = vpop.f32.mrb[0].mxu0
        %v1233 = vpop.f32.mrb[0].mxu0
        %v1234 = vadd.f32 %v1145, %v1233
        %v1235 = vpop.f32.mrb[0].mxu0
        %1236 = vmatprep.mubr.bf16.mxu0 0
        %1237 = vmatmul.mubr.bf16.gmra.mrb[0].mxu0 %v912
        %v1238 = vpop.f32.mrb[0].mxu0
        %v1239 = vadd.f32 %v1150, %v1238
        %v1240 = vpop.f32.mrb[0].mxu0
        %v1241 = vpop.f32.mrb[0].mxu0
        %v1242 = vadd.f32 %v1153, %v1241
        %v1243 = vpop.f32.mrb[0].mxu0
        %1244 = vmatprep.mubr.bf16.mxu0 0
        %1245 = vmatmul.mubr.bf16.gmra.mrb[0].mxu0 %v915
        %v1246 = vpop.f32.mrb[0].mxu0
        %v1247 = vadd.f32 %v1158, %v1246
        %v1248 = vpop.f32.mrb[0].mxu0
        %v1249 = vpop.f32.mrb[0].mxu0
        %v1250 = vadd.f32 %v1161, %v1249
        %v1251 = vpop.f32.mrb[0].mxu0
        %1252 = vmatprep.mubr.bf16.mxu0 0
        %1253 = vmatmul.mubr.bf16.gmra.mrb[0].mxu0 %v918
        %v1254 = vpop.f32.mrb[0].mxu0
        %v1255 = vadd.f32 %v1166, %v1254
        %v1256 = vpop.f32.mrb[0].mxu0
        %v1257 = vpop.f32.mrb[0].mxu0
        %v1258 = vadd.f32 %v1169, %v1257
        %v1259 = vpop.f32.mrb[0].mxu0
        %1260 = vmatprep.mubr.bf16.mxu0 0
        %1261 = vmatmul.mubr.bf16.gmra.mrb[0].mxu0 %v921
        %v1262 = vpop.f32.mrb[0].mxu0
        %v1263 = vadd.f32 %v1174, %v1262
        %v1264 = vpop.f32.mrb[0].mxu0
        %v1265 = vpop.f32.mrb[0].mxu0
        %v1266 = vadd.f32 %v1177, %v1265
        %v1267 = vpop.f32.mrb[0].mxu0
        %1268 = vmatprep.mubr.bf16.mxu0 0
        %1269 = vmatmul.mubr.bf16.gmra.mrb[0].mxu0 %v924
        %v1270 = vpop.f32.mrb[0].mxu0
        %v1271 = vadd.f32 %v1182, %v1270
        %v1272 = vpop.f32.mrb[0].mxu0
        %v1273 = vpop.f32.mrb[0].mxu0
        %v1274 = vadd.f32 %v1185, %v1273
        %v1275 = vpop.f32.mrb[0].mxu0
        %1276 = vmatprep.mubr.bf16.mxu0 0
        %1277 = vmatmul.mubr.bf16.gmra.mrb[0].mxu0 %v927
        %v1278 = vpop.f32.mrb[0].mxu0
        %v1279 = vadd.f32 %v1190, %v1278
        %v1280 = vpop.f32.mrb[0].mxu0
        %v1281 = vpop.f32.mrb[0].mxu0
        %v1282 = vadd.f32 %v1193, %v1281
        %v1283 = vpop.f32.mrb[0].mxu0
        %1284 = vdwg.mxu0
        %v1285 = vmax.f32 %v1231, 0.0
        %v1286 = vmax.f32 %v1234, 0.0
        %v1287 = vmax.f32 %v1239, 0.0
        %v1288 = vmax.f32 %v1242, 0.0
        %v1289 = vmax.f32 %v1247, 0.0
        %v1290 = vmax.f32 %v1250, 0.0
        %v1291 = vmax.f32 %v1255, 0.0
        %v1292 = vmax.f32 %v1258, 0.0
        %v1293 = vmax.f32 %v1263, 0.0
        %v1294 = vmax.f32 %v1266, 0.0
        %v1295 = vmax.f32 %v1271, 0.0
        %v1296 = vmax.f32 %v1274, 0.0
        %v1297 = vmax.f32 %v1279, 0.0
        %v1298 = vmax.f32 %v1282, 0.0
        %v1299 = vpack.c.bf16 %v1286, %v1285
        %v1300 = vpack.c.bf16 %v1288, %v1287
        %v1301 = vpack.c.bf16 %v1290, %v1289
        %v1302 = vpack.c.bf16 %v1292, %v1291
        %v1303 = vpack.c.bf16 %v1294, %v1293
        %v1304 = vpack.c.bf16 %v1296, %v1295
        %v1305 = vpack.c.bf16 %v1298, %v1297
        %v1306 = vld [vmem:[#allocation7] sm:$0xf]
        %v1307 = vld [vmem:[#allocation7 + $0x4] sm:$0xf]
        %v1308 = vld [vmem:[#allocation7 + $0x8] sm:$0xf]
        %v1309 = vld [vmem:[#allocation7 + $0xc] sm:$0xf]
        %v1310 = vld [vmem:[#allocation7 + $0x10] sm:$0xf]
        %v1311 = vld [vmem:[#allocation7 + $0x14] sm:$0xf]
        %v1312 = vld [vmem:[#allocation7 + $0x18] sm:$0xf]
        %v1313 = vld [vmem:[#allocation7 + $0x1c] sm:$0xf]
        %v1314 = vld [vmem:[#allocation7 + $0x20] sm:$0xf]
        %v1315 = vld [vmem:[#allocation7 + $0x24] sm:$0xf]
        %v1316 = vld [vmem:[#allocation7 + $0x28] sm:$0xf]
        %v1317 = vld [vmem:[#allocation7 + $0x2c] sm:$0xf]
        %v1318 = vld [vmem:[#allocation7 + $0x30] sm:$0xf]
        %v1319 = vld [vmem:[#allocation7 + $0x34] sm:$0xf]
        %v1320 = vld [vmem:[#allocation7 + $0x38] sm:$0xf]
        %v1321 = vld [vmem:[#allocation7 + $0x3c] sm:$0xf]
        %v1322 = vld [vmem:[%s4] sm:$0x1]
        %v1324 = vlaneseq
        %v1325 = vshrl.u32 %v1324, 7
        %v1326 = vsub.s32 0, %v1325
        %v1327 = vrot.slane %v1322, %v1326
        %v1345 = vunpack.c.l.b16 %v1306
        %v1346 = vunpack.c.l.b16 %v1307
        %v1347 = vunpack.c.l.b16 %v1308
        %v1348 = vunpack.c.l.b16 %v1309
        %v1349 = vunpack.c.l.b16 %v1310
        %v1350 = vunpack.c.l.b16 %v1311
        %v1351 = vunpack.c.l.b16 %v1312
        %v1352 = vunpack.c.l.b16 %v1313
        %v1353 = vunpack.c.l.b16 %v1314
        %v1354 = vunpack.c.l.b16 %v1315
        %v1355 = vunpack.c.l.b16 %v1316
        %v1356 = vunpack.c.l.b16 %v1317
        %v1357 = vunpack.c.l.b16 %v1318
        %v1358 = vunpack.c.l.b16 %v1319
        %v1359 = vunpack.c.l.b16 %v1320
        %v1360 = vunpack.c.l.b16 %v1321
        %v1361 = vpack.c.b16 %v1346, %v1345
        %v1362 = vpack.c.b16 %v1348, %v1347
        %v1363 = vpack.c.b16 %v1350, %v1349
        %v1364 = vpack.c.b16 %v1352, %v1351
        %v1365 = vpack.c.b16 %v1354, %v1353
        %v1366 = vpack.c.b16 %v1356, %v1355
        %v1367 = vpack.c.b16 %v1358, %v1357
        %v1368 = vpack.c.b16 %v1360, %v1359
        %1377 = vmatprep.subr.bf16.mxu0 0
        %1378 = vmatpush1.bf16.msra.mxu0 %v1361
        %1379 = vmatprep.subr.bf16.mxu0 0
        %1380 = vmatpush1.bf16.msra.mxu0 %v1362
        %1381 = vmatprep.subr.bf16.mxu0 0
        %1382 = vmatpush1.bf16.msra.mxu0 %v1363
        %1383 = vmatprep.subr.bf16.mxu0 0
        %1384 = vmatpush1.bf16.msra.mxu0 %v1364
        %1385 = vmatprep.subr.bf16.mxu0 0
        %1386 = vmatpush1.bf16.msra.mxu0 %v1365
        %1387 = vmatprep.subr.bf16.mxu0 0
        %1388 = vmatpush1.bf16.msra.mxu0 %v1366
        %1389 = vmatprep.subr.bf16.mxu0 0
        %1390 = vmatpush1.bf16.msra.mxu0 %v1367
        %1391 = vmatprep.subr.bf16.mxu0 0
        %1392 = vmatpush1.bf16.msra.mxu0 %v1368
        %1393 = vmatprep.subr.bf16.mxu0 0
        %1394 = vmatpush1.bf16.msra.mxu0 0
        %1395 = vmatprep.subr.bf16.mxu0 0
        %1396 = vmatpush1.bf16.msra.mxu0 0
        %1397 = vmatprep.subr.bf16.mxu0 0
        %1398 = vmatpush1.bf16.msra.mxu0 0
        %1399 = vmatprep.subr.bf16.mxu0 0
        %1400 = vmatpush1.bf16.msra.mxu0 0
        %1401 = vmatprep.subr.bf16.mxu0 0
        %1402 = vmatpush1.bf16.msra.mxu0 0
        %1403 = vmatprep.subr.bf16.mxu0 0
        %1404 = vmatpush1.bf16.msra.mxu0 0
        %1405 = vmatprep.subr.bf16.mxu0 0
        %1406 = vmatpush1.bf16.msra.mxu0 0
        %1407 = vmatprep.subr.bf16.mxu0 0
        %1408 = vmatpush1.bf16.msra.mxu0 0
        %1409 = vmatprep.mubr.bf16.mxu0 0
        %1410 = vmatmul.mubr.bf16.gmra.mrb[0].mxu0 %v1299
        %v1411 = vpop.f32.mrb[0].mxu0
        %v1412 = vadd.f32 %v1327, %v1411
        %v1413 = vpop.f32.mrb[0].mxu0
        %v1414 = vpop.f32.mrb[0].mxu0
        %v1415 = vadd.f32 %v1327, %v1414
        %v1416 = vpop.f32.mrb[0].mxu0
        %1417 = vmatprep.mubr.bf16.mxu0 0
        %1418 = vmatmul.mubr.bf16.gmra.mrb[0].mxu0 %v1300
        %v1419 = vpop.f32.mrb[0].mxu0
        %v1420 = vadd.f32 %v1327, %v1419
        %v1421 = vpop.f32.mrb[0].mxu0
        %v1422 = vpop.f32.mrb[0].mxu0
        %v1423 = vadd.f32 %v1327, %v1422
        %v1424 = vpop.f32.mrb[0].mxu0
        %1425 = vmatprep.mubr.bf16.mxu0 0
        %1426 = vmatmul.mubr.bf16.gmra.mrb[0].mxu0 %v1301
        %v1427 = vpop.f32.mrb[0].mxu0
        %v1428 = vadd.f32 %v1327, %v1427
        %v1429 = vpop.f32.mrb[0].mxu0
        %v1430 = vpop.f32.mrb[0].mxu0
        %v1431 = vadd.f32 %v1327, %v1430
        %v1432 = vpop.f32.mrb[0].mxu0
        %1433 = vmatprep.mubr.bf16.mxu0 0
        %1434 = vmatmul.mubr.bf16.gmra.mrb[0].mxu0 %v1302
        %v1435 = vpop.f32.mrb[0].mxu0
        %v1436 = vadd.f32 %v1327, %v1435
        %v1437 = vpop.f32.mrb[0].mxu0
        %v1438 = vpop.f32.mrb[0].mxu0
        %v1439 = vadd.f32 %v1327, %v1438
        %v1440 = vpop.f32.mrb[0].mxu0
        %1441 = vmatprep.mubr.bf16.mxu0 0
        %1442 = vmatmul.mubr.bf16.gmra.mrb[0].mxu0 %v1303
        %v1443 = vpop.f32.mrb[0].mxu0
        %v1444 = vadd.f32 %v1327, %v1443
        %v1445 = vpop.f32.mrb[0].mxu0
        %v1446 = vpop.f32.mrb[0].mxu0
        %v1447 = vadd.f32 %v1327, %v1446
        %v1448 = vpop.f32.mrb[0].mxu0
        %1449 = vmatprep.mubr.bf16.mxu0 0
        %1450 = vmatmul.mubr.bf16.gmra.mrb[0].mxu0 %v1304
        %v1451 = vpop.f32.mrb[0].mxu0
        %v1452 = vadd.f32 %v1327, %v1451
        %v1453 = vpop.f32.mrb[0].mxu0
        %v1454 = vpop.f32.mrb[0].mxu0
        %v1455 = vadd.f32 %v1327, %v1454
        %v1456 = vpop.f32.mrb[0].mxu0
        %1457 = vmatprep.mubr.bf16.mxu0 0
        %1458 = vmatmul.mubr.bf16.gmra.mrb[0].mxu0 %v1305
        %v1459 = vpop.f32.mrb[0].mxu0
        %v1460 = vadd.f32 %v1327, %v1459
        %v1461 = vpop.f32.mrb[0].mxu0
        %v1462 = vpop.f32.mrb[0].mxu0
        %v1463 = vadd.f32 %v1327, %v1462
        %v1464 = vpop.f32.mrb[0].mxu0
        %1465 = vdwg.mxu0
        %v1466 = vmax.f32 %v1412, 0.0
        %v1467 = vmax.f32 %v1415, 0.0
        %v1468 = vmax.f32 %v1420, 0.0
        %v1469 = vmax.f32 %v1423, 0.0
        %v1470 = vmax.f32 %v1428, 0.0
        %v1471 = vmax.f32 %v1431, 0.0
        %v1472 = vmax.f32 %v1436, 0.0
        %v1473 = vmax.f32 %v1439, 0.0
        %v1474 = vmax.f32 %v1444, 0.0
        %v1475 = vmax.f32 %v1447, 0.0
        %v1476 = vmax.f32 %v1452, 0.0
        %v1477 = vmax.f32 %v1455, 0.0
        %v1478 = vmax.f32 %v1460, 0.0
        %v1479 = vmax.f32 %v1463, 0.0
        %v1480 = vpack.c.bf16 %v1467, %v1466
        %v1481 = vpack.c.bf16 %v1469, %v1468
        %v1482 = vpack.c.bf16 %v1471, %v1470
        %v1483 = vpack.c.bf16 %v1473, %v1472
        %v1484 = vpack.c.bf16 %v1475, %v1474
        %v1485 = vpack.c.bf16 %v1477, %v1476
        %v1486 = vpack.c.bf16 %v1479, %v1478
        %v1487 = vld [vmem:[#allocation8] sm:$0xf]
        %v1488 = vld [vmem:[#allocation8 + $0x4] sm:$0xf]
        %v1489 = vld [vmem:[#allocation8 + $0x8] sm:$0xf]
        %v1490 = vld [vmem:[#allocation8 + $0xc] sm:$0xf]
        %v1491 = vld [vmem:[#allocation8 + $0x10] sm:$0xf]
        %v1492 = vld [vmem:[#allocation8 + $0x14] sm:$0xf]
        %v1493 = vld [vmem:[#allocation8 + $0x18] sm:$0xf]
        %v1494 = vld [vmem:[#allocation8 + $0x1c] sm:$0xf]
        %v1495 = vld [vmem:[#allocation8 + $0x20] sm:$0xf]
        %v1496 = vld [vmem:[#allocation8 + $0x24] sm:$0xf]
        %v1497 = vld [vmem:[#allocation8 + $0x28] sm:$0xf]
        %v1498 = vld [vmem:[#allocation8 + $0x2c] sm:$0xf]
        %v1499 = vld [vmem:[#allocation8 + $0x30] sm:$0xf]
        %v1500 = vld [vmem:[#allocation8 + $0x34] sm:$0xf]
        %v1501 = vld [vmem:[#allocation8 + $0x38] sm:$0xf]
        %v1502 = vld [vmem:[#allocation8 + $0x3c] sm:$0xf]
        %v1503 = vld [vmem:[%s6] sm:$0x1]
        %v1505 = vlaneseq
        %v1506 = vshrl.u32 %v1505, 7
        %v1507 = vsub.s32 0, %v1506
        %v1508 = vrot.slane %v1503, %v1507
        %v1526 = vunpack.c.l.b16 %v1487
        %v1527 = vunpack.c.l.b16 %v1488
        %v1528 = vunpack.c.l.b16 %v1489
        %v1529 = vunpack.c.l.b16 %v1490
        %v1530 = vunpack.c.l.b16 %v1491
        %v1531 = vunpack.c.l.b16 %v1492
        %v1532 = vunpack.c.l.b16 %v1493
        %v1533 = vunpack.c.l.b16 %v1494
        %v1534 = vunpack.c.l.b16 %v1495
        %v1535 = vunpack.c.l.b16 %v1496
        %v1536 = vunpack.c.l.b16 %v1497
        %v1537 = vunpack.c.l.b16 %v1498
        %v1538 = vunpack.c.l.b16 %v1499
        %v1539 = vunpack.c.l.b16 %v1500
        %v1540 = vunpack.c.l.b16 %v1501
        %v1541 = vunpack.c.l.b16 %v1502
        %v1542 = vpack.c.b16 %v1527, %v1526
        %v1543 = vpack.c.b16 %v1529, %v1528
        %v1544 = vpack.c.b16 %v1531, %v1530
        %v1545 = vpack.c.b16 %v1533, %v1532
        %v1546 = vpack.c.b16 %v1535, %v1534
        %v1547 = vpack.c.b16 %v1537, %v1536
        %v1548 = vpack.c.b16 %v1539, %v1538
        %v1549 = vpack.c.b16 %v1541, %v1540
        %1558 = vmatprep.subr.bf16.mxu0 0
        %1559 = vmatpush1.bf16.msra.mxu0 %v1542
        %1560 = vmatprep.subr.bf16.mxu0 0
        %1561 = vmatpush1.bf16.msra.mxu0 %v1543
        %1562 = vmatprep.subr.bf16.mxu0 0
        %1563 = vmatpush1.bf16.msra.mxu0 %v1544
        %1564 = vmatprep.subr.bf16.mxu0 0
        %1565 = vmatpush1.bf16.msra.mxu0 %v1545
        %1566 = vmatprep.subr.bf16.mxu0 0
        %1567 = vmatpush1.bf16.msra.mxu0 %v1546
        %1568 = vmatprep.subr.bf16.mxu0 0
        %1569 = vmatpush1.bf16.msra.mxu0 %v1547
        %1570 = vmatprep.subr.bf16.mxu0 0
        %1571 = vmatpush1.bf16.msra.mxu0 %v1548
        %1572 = vmatprep.subr.bf16.mxu0 0
        %1573 = vmatpush1.bf16.msra.mxu0 %v1549
        %1574 = vmatprep.subr.bf16.mxu0 0
        %1575 = vmatpush1.bf16.msra.mxu0 0
        %1576 = vmatprep.subr.bf16.mxu0 0
        %1577 = vmatpush1.bf16.msra.mxu0 0
        %1578 = vmatprep.subr.bf16.mxu0 0
        %1579 = vmatpush1.bf16.msra.mxu0 0
        %1580 = vmatprep.subr.bf16.mxu0 0
        %1581 = vmatpush1.bf16.msra.mxu0 0
        %1582 = vmatprep.subr.bf16.mxu0 0
        %1583 = vmatpush1.bf16.msra.mxu0 0
        %1584 = vmatprep.subr.bf16.mxu0 0
        %1585 = vmatpush1.bf16.msra.mxu0 0
        %1586 = vmatprep.subr.bf16.mxu0 0
        %1587 = vmatpush1.bf16.msra.mxu0 0
        %1588 = vmatprep.subr.bf16.mxu0 0
        %1589 = vmatpush1.bf16.msra.mxu0 0
        %1590 = vmatprep.mubr.bf16.mxu0 0
        %1591 = vmatmul.mubr.bf16.gmra.mrb[0].mxu0 %v1480
        %v1592 = vpop.f32.mrb[0].mxu0
        %v1593 = vadd.f32 %v1508, %v1592
        %v1594 = vpop.f32.mrb[0].mxu0
        %v1595 = vpop.f32.mrb[0].mxu0
        %v1596 = vadd.f32 %v1508, %v1595
        %v1597 = vpop.f32.mrb[0].mxu0
        %1598 = vmatprep.mubr.bf16.mxu0 0
        %1599 = vmatmul.mubr.bf16.gmra.mrb[0].mxu0 %v1481
        %v1600 = vpop.f32.mrb[0].mxu0
        %v1601 = vadd.f32 %v1508, %v1600
        %v1602 = vpop.f32.mrb[0].mxu0
        %v1603 = vpop.f32.mrb[0].mxu0
        %v1604 = vadd.f32 %v1508, %v1603
        %v1605 = vpop.f32.mrb[0].mxu0
        %1606 = vmatprep.mubr.bf16.mxu0 0
        %1607 = vmatmul.mubr.bf16.gmra.mrb[0].mxu0 %v1482
        %v1608 = vpop.f32.mrb[0].mxu0
        %v1609 = vadd.f32 %v1508, %v1608
        %v1610 = vpop.f32.mrb[0].mxu0
        %v1611 = vpop.f32.mrb[0].mxu0
        %v1612 = vadd.f32 %v1508, %v1611
        %v1613 = vpop.f32.mrb[0].mxu0
        %1614 = vmatprep.mubr.bf16.mxu0 0
        %1615 = vmatmul.mubr.bf16.gmra.mrb[0].mxu0 %v1483
        %v1616 = vpop.f32.mrb[0].mxu0
        %v1617 = vadd.f32 %v1508, %v1616
        %v1618 = vpop.f32.mrb[0].mxu0
        %v1619 = vpop.f32.mrb[0].mxu0
        %v1620 = vadd.f32 %v1508, %v1619
        %v1621 = vpop.f32.mrb[0].mxu0
        %1622 = vmatprep.mubr.bf16.mxu0 0
        %1623 = vmatmul.mubr.bf16.gmra.mrb[0].mxu0 %v1484
        %v1624 = vpop.f32.mrb[0].mxu0
        %v1625 = vadd.f32 %v1508, %v1624
        %v1626 = vpop.f32.mrb[0].mxu0
        %v1627 = vpop.f32.mrb[0].mxu0
        %v1628 = vadd.f32 %v1508, %v1627
        %v1629 = vpop.f32.mrb[0].mxu0
        %1630 = vmatprep.mubr.bf16.mxu0 0
        %1631 = vmatmul.mubr.bf16.gmra.mrb[0].mxu0 %v1485
        %v1632 = vpop.f32.mrb[0].mxu0
        %v1633 = vadd.f32 %v1508, %v1632
        %v1634 = vpop.f32.mrb[0].mxu0
        %v1635 = vpop.f32.mrb[0].mxu0
        %v1636 = vadd.f32 %v1508, %v1635
        %v1637 = vpop.f32.mrb[0].mxu0
        %1638 = vmatprep.mubr.bf16.mxu0 0
        %1639 = vmatmul.mubr.bf16.gmra.mrb[0].mxu0 %v1486
        %v1640 = vpop.f32.mrb[0].mxu0
        %v1641 = vadd.f32 %v1508, %v1640
        %v1642 = vpop.f32.mrb[0].mxu0
        %v1643 = vpop.f32.mrb[0].mxu0
        %v1644 = vadd.f32 %v1508, %v1643
        %v1645 = vpop.f32.mrb[0].mxu0
        %1646 = vdwg.mxu0
        %1647 = vst [vmem:[%s348] sm:$0xff] %v1593
        %1648 = vst [vmem:[%s348 + $0x8] sm:$0xff] %v1596
        %1649 = vst [vmem:[%s348 + $0x10] sm:$0xff] %v1601
        %1650 = vst [vmem:[%s348 + $0x18] sm:$0xff] %v1604
        %1651 = vst [vmem:[%s348 + $0x20] sm:$0xff] %v1609
        %1652 = vst [vmem:[%s348 + $0x28] sm:$0xff] %v1612
        %1653 = vst [vmem:[%s348 + $0x30] sm:$0xff] %v1617
        %1654 = vst [vmem:[%s348 + $0x38] sm:$0xff] %v1620
        %1655 = vst [vmem:[%s348 + $0x40] sm:$0xff] %v1625
        %1656 = vst [vmem:[%s348 + $0x48] sm:$0xff] %v1628
        %1657 = vst [vmem:[%s348 + $0x50] sm:$0xff] %v1633
        %1658 = vst [vmem:[%s348 + $0x58] sm:$0xff] %v1636
        %1659 = vst [vmem:[%s348 + $0x60] sm:$0xff] %v1641
        %1660 = vst [vmem:[%s348 + $0x68] sm:$0xff] %v1644
        %s1661 = sand.u32 %s186, 1
        %s1662 = scalar_lea.sflag [#allocation4], %s1661
        %s1663 = sand.u32 %s186, 1
        %s1664 = smul.addr %s1663, 112
        %s1665 = scalar_lea.vmem [#allocation10], %s1664
        // Predicated region
        $region65: #{tpu_custom_call.1} parent=47 // pred_check
          %p1666 = pneg %p196
        $region66: #{tpu_custom_call.1} parent=47 // pred_check_branch
          %1668 = sbr.rel (%p1666) target = $region68
        $region67: #{tpu_custom_call.1} parent=47 // pred_region
          %s1669 = smul.u32 14, %s26
          %s1670 = ssub.s32 25, %s1669
          %p1671 = scmp.lt.s32.totalorder %s1670, 14
          %s1672 = scalar_select %p1671, %s1670, 14
          %s1673 = smul.u32 128, %s1672
          %s1675 = ssub.s32 1792, %s1673
          %1676 = vsyncadd %s1662, %s1675
          %p1677 = scmp.ne.s32.totalorder 0, %s1673
          %s1678 = smul.addr %s1669, 128
          %s1679 = scalar_lea.hbm %s7, %s1678
          %s1680 = smul.u32 8, %s1672
          %s1681 = sshll.u32 %s1665, 4
          %s1682 = int_to_ptr.vmem [resolvable:$true] %s1681
          %s1683 = sshll.u32 %s1680, 4
          %1687 = dma.vmem_to_hbm [thread:$0]  (%p1677), %s1682, %s1683, %s1679, %s1662, 128, 128, 8
        $region68: #{tpu_custom_call.1} parent=47 // pred_fallthru
          _
      $region48: #{tpu_custom_call.1} parent=5 // pred_fallthru
        _
      %p1688 = scmp.le.s32.totalorder 2, %s21
      // Predicated region
      $region69: #{tpu_custom_call.1} parent=5 // pred_check
        %p1689 = pneg %p1688
      $region70: #{tpu_custom_call.1} parent=5 // pred_check_branch
        %1691 = sbr.rel (%p1689) target = $region72
      $region71: #{tpu_custom_call.1} parent=5 // pred_region
        %s1692 = ssub.s32 %s21, 2
        // Predicated region
        $region73: #{tpu_custom_call.1} parent=71 // pred_check
          %p1693 = pneg %p202
        $region74: #{tpu_custom_call.1} parent=71 // pred_check_branch
          %1695 = sbr.rel (%p1693) target = $region76
        $region75: #{tpu_custom_call.1} parent=71 // pred_region
          %s1696 = sand.u32 %s187, 1
          %s1697 = scalar_lea.sflag [#allocation4], %s1696
          %s1698 = sand.u32 %s187, 1
          %s1699 = smul.addr %s1698, 112
          %s1700 = scalar_lea.vmem [#allocation10], %s1699
          %1701 = dma.done %s1697, 1792
        $region76: #{tpu_custom_call.1} parent=71 // pred_fallthru
          _
      $region72: #{tpu_custom_call.1} parent=5 // pred_fallthru
        _
    $region6: #{tpu_custom_call.1} parent=1 // loop_footer
      %s25 = sadd.s32 1, %s21
    $region7: #{tpu_custom_call.1} parent=1 // loop_footer_branch
      %20 = sbr.rel target = $region3
    $region8: #{tpu_custom_call.1} parent=1 // loop_exit
      _
    %1702 = vsyncpa [#allocation3], 1
    %s1703 = scalar_lea.sflag [#allocation3], 1
    %1704 = vsyncpa %s1703, 1
    %1705 = vsyncpa [#allocation6], 1
    %1706 = vsyncpa [#allocation9], 1
    %1707 = vsyncpa [#allocation4], 1
    %s1708 = scalar_lea.sflag [#allocation4], 1
    %1709 = vsyncpa %s1708, 1

</llo_original>
